<compile_context>
chip_gen: v7x
topology: tpu7x:2x2x1
jax: 0.10.0
libtpu: 0.0.40
codegen_flags: <defaults>
</compile_context>

<pallas_src>
import functools

import jax
import jax.numpy as jnp
from jax.experimental import pallas as pl
from jax.experimental.pallas import tpu as pltpu


C_PAD = 128     # lane-dense padded class axis
_ALIGN = 16     # pad V / E to multiples of 16 (bf16 sublane tile)


def _round_up(x, m):
    return (x + m - 1) // m * m


def _full2(shape):
    # whole-array 2-D block, single grid step
    return pl.BlockSpec(shape, lambda i: (0, 0))


# -----------------------------------------------------------------------------
# Fused forward kernel
# -----------------------------------------------------------------------------
def _fused_forward_kernel(*refs, L, seg, pool_pad):
    """Fused HGNN forward: all GNN layers + pooling heads + prediction sum.

    refs layout (all 2-D):
      inputs : Hdv(V,E) HT(E,V) Sde(E,E) h0(V,D0) tf3(V,3)
               gnn_w[L] gnn_b[L]
               att_wh[L+1] att_wt3[L+1] pred_w[L+1]
               pred_bias(1,C_PAD)
      outputs: pred(B,C_PAD) pooled(B,pool_pad)
    """
    f32, bf16 = jnp.float32, jnp.bfloat16
    P = L + 1
    n_in = 5 + 2 * L + 3 * P + 1
    ins = refs[:n_in]
    pred_out_ref, pooled_out_ref = refs[n_in], refs[n_in + 1]

    hdv_ref, ht_ref, s_ref, h0_ref, tf_ref = ins[:5]
    pos = 5
    gnn_w = ins[pos:pos + L]; pos += L
    gnn_b = ins[pos:pos + L]; pos += L
    att_wh = ins[pos:pos + P]; pos += P
    att_wt3 = ins[pos:pos + P]; pos += P
    pred_w = ins[pos:pos + P]; pos += P
    pred_bias_ref = ins[pos]

    Hdv = hdv_ref[...]        # (V, E) bf16, rows pre-scaled by Dv^-1
    HT = ht_ref[...]          # (E, V) bf16, transpose precomputed on host
    Sde = s_ref[...]          # (E, E) bf16, cols pre-scaled by De^-1
    tf3 = tf_ref[...]         # (V, 3) f32  [tf, idf, 1]  (bias folded into wt3)

    B = len(seg)

    # ---- HGNN layers (unrolled; h stays resident on-chip) -------------------
    h_list = [h0_ref[...].astype(f32)]
    for l in range(L):
        h_bf = h_list[-1].astype(bf16)
        he = jnp.dot(HT, h_bf, preferred_element_type=f32)                # H^T h          (E, Din)
        he = jnp.dot(Sde, he.astype(bf16), preferred_element_type=f32)    # S De^-1 .      (E, Din)
        hv = jnp.dot(Hdv, he.astype(bf16), preferred_element_type=f32)    # Dv^-1 H .      (V, Din)
        y = jnp.dot(hv.astype(bf16), gnn_w[l][...],
                    preferred_element_type=f32) + gnn_b[l][...]
        h_list.append(jnp.maximum(y, 0.0))                                # ReLU
        # dropout: eval-mode identity

    # ---- per-layer graph pooling + prediction heads --------------------------
    pred = jnp.zeros((B, C_PAD), f32) + pred_bias_ref[...]                # summed biases
    pooled_blocks = []
    for l in range(P):
        hl = h_list[l]                                                    # (V, D_l) f32
        # attention scores on concat([h, tf_idf]) == h@wh + [tf,idf,1]@wt3
        scores = (jnp.dot(hl, att_wh[l][...], preferred_element_type=f32)
                  + jnp.dot(tf3, att_wt3[l][...], preferred_element_type=f32))  # (V, 1)
        rows = []
        for (off, cnt) in seg:                                            # graphs = contiguous blocks
            sc = scores[off:off + cnt, :]                                 # (cnt, 1)
            hb = hl[off:off + cnt, :]                                     # (cnt, D)
            m = jnp.max(sc, axis=0, keepdims=True)                        # per-graph max (stable)
            e = jnp.exp(sc - m)                                           # (cnt, 1)
            den = jnp.sum(e, axis=0, keepdims=True) + 1e-10
            att = jnp.sum(e * hb, axis=0, keepdims=True) / den            # (1, D) attention pool
            mx = jnp.max(hb, axis=0, keepdims=True)                       # (1, D) max pool
            rows.append(jnp.concatenate([att, mx], axis=1))               # (1, 2D)
        pooled = jnp.concatenate(rows, axis=0)                            # (B, 2D)
        pooled_blocks.append(pooled)
        pred = pred + jnp.dot(pooled.astype(bf16), pred_w[l][...],
                              preferred_element_type=f32)                 # (B, C_PAD)

    pred_out_ref[...] = pred                                              # lane-dense store
    total = sum(blk.shape[1] for blk in pooled_blocks)
    if total < pool_pad:
        pooled_blocks.append(jnp.zeros((B, pool_pad - total), f32))
    pooled_out_ref[...] = jnp.concatenate(pooled_blocks, axis=1)          # lane-dense store


# -----------------------------------------------------------------------------
# Forward wrapper (host glue: gather + structural folds + padding)
# -----------------------------------------------------------------------------
def hgnn_forward(params, x_ids, H, dv, de, S, tf_idf, targets,
                 nodes_per_graph, num_layers, num_classes):
    f32, bf16 = jnp.float32, jnp.bfloat16
    L = num_layers - 1
    V, E = H.shape
    Vp, Ep = _round_up(V, _ALIGN), _round_up(E, _ALIGN)
    B = len(nodes_per_graph)

    # static contiguous graph segments (node blocks, as get_features builds them)
    seg, off = [], 0
    for n in nodes_per_graph:
        seg.append((off, int(n)))
        off += int(n)
    seg = tuple(seg)

    # one-time host-side structural folds (dense analogue of get_features)
    Hdv = jnp.pad(dv * H, ((0, Vp - V), (0, Ep - E))).astype(bf16)            # Dv^-1 H
    HT = jnp.pad(H.T, ((0, Ep - E), (0, Vp - V))).astype(bf16)                # H^T (no in-kernel transpose)
    Sde = jnp.pad(S * de.reshape(1, E), ((0, Ep - E), (0, Ep - E))).astype(bf16)  # S De^-1

    h0 = params["emb"][x_ids]                                                 # embedding gather (glue)
    h0 = jnp.pad(h0, ((0, Vp - V), (0, 0))).astype(f32)
    tf3 = jnp.concatenate([tf_idf.astype(f32), jnp.ones((V, 1), f32)], axis=1)
    tf3 = jnp.pad(tf3, ((0, Vp - V), (0, 0)))

    gnn_w = [w.astype(bf16) for w in params["gnn_w"]]
    gnn_b = [b.reshape(1, -1).astype(f32) for b in params["gnn_b"]]

    att_wh, att_wt3, pred_w = [], [], []
    for l in range(num_layers):
        w_att = params["att_w"][l].astype(f32)
        b_att = params["att_b"][l].astype(f32)
        D = w_att.shape[0] - 2
        att_wh.append(w_att[:D])                                              # (D, 1)
        att_wt3.append(jnp.concatenate([w_att[D:], b_att.reshape(1, 1)], axis=0))  # (3, 1) bias folded
        pw = params["pred_w"][l]
        pred_w.append(jnp.pad(pw, ((0, 0), (0, C_PAD - pw.shape[1]))).astype(bf16))
    pred_bias = sum(params["pred_b"])                                         # biases commute with the sum
    pred_bias = jnp.pad(pred_bias.reshape(1, -1),
                        ((0, 0), (0, C_PAD - num_classes))).astype(f32)

    dims = [h0.shape[1]] + [params["gnn_w"][l].shape[1] for l in range(L)]
    total = sum(2 * d for d in dims)
    pool_pad = _round_up(total, 128)

    inputs = ([Hdv, HT, Sde, h0, tf3] + gnn_w + gnn_b
              + att_wh + att_wt3 + pred_w + [pred_bias])

    pred_pad, pooled_pad = pl.pallas_call(
        functools.partial(_fused_forward_kernel, L=L, seg=seg, pool_pad=pool_pad),
        out_shape=(jax.ShapeDtypeStruct((B, C_PAD), f32),
                   jax.ShapeDtypeStruct((B, pool_pad), f32)),
        grid=(1,),
        in_specs=[_full2(a.shape) for a in inputs],
        out_specs=(_full2((B, C_PAD)), _full2((B, pool_pad))),
        compiler_params=pltpu.CompilerParams(
            dimension_semantics=("arbitrary",),
            vmem_limit_bytes=32 * 1024 * 1024),
    )(*inputs)

    pred = pred_pad[:, :num_classes]
    pooled_h_ls = pooled_pad[:, :total]
    return pred, targets, pooled_h_ls


# -----------------------------------------------------------------------------
# Parameters
# -----------------------------------------------------------------------------
def init_params(key, vocab, input_dim, hidden_dim, num_classes, num_layers):
    ks = jax.random.split(key, 32)
    ki = iter(ks)
    emb = 0.1 * jax.random.normal(next(ki), (vocab, input_dim), jnp.float32)
    emb = emb.at[0].set(0.0)  # padding_idx=0
    gnn_w, gnn_b = [], []
    att_w, att_b = [], []
    pred_w, pred_b = [], []
    for layer in range(num_layers - 1):
        din = input_dim if layer == 0 else hidden_dim
        gnn_w.append(0.1 * jax.random.normal(next(ki), (din, hidden_dim), jnp.float32))
        gnn_b.append(jnp.zeros((hidden_dim,), jnp.float32))
        att_w.append(0.1 * jax.random.normal(next(ki), (din + 2, 1), jnp.float32))
        att_b.append(jnp.zeros((1,), jnp.float32))
        pred_w.append(0.1 * jax.random.normal(next(ki), (2 * din, num_classes), jnp.float32))
        pred_b.append(jnp.zeros((num_classes,), jnp.float32))
    # extra attention + prediction head for the last entry of h_cat
    att_w.append(0.1 * jax.random.normal(next(ki), (hidden_dim + 2, 1), jnp.float32))
    att_b.append(jnp.zeros((1,), jnp.float32))
    pred_w.append(0.1 * jax.random.normal(next(ki), (2 * hidden_dim, num_classes), jnp.float32))
    pred_b.append(jnp.zeros((num_classes,), jnp.float32))
    return dict(emb=emb, gnn_w=gnn_w, gnn_b=gnn_b,
                att_w=att_w, att_b=att_b, pred_w=pred_w, pred_b=pred_b)


# -----------------------------------------------------------------------------
# Synthetic graph batch (replaces get_features host-side preprocessing)
# -----------------------------------------------------------------------------
def make_synthetic_batch(key, nodes_per_graph, edges_per_graph, vocab):
    B = len(nodes_per_graph)
    V = sum(nodes_per_graph)
    E = sum(edges_per_graph)
    k1, k2, k3, k4 = jax.random.split(key, 4)

    node_graph = jnp.concatenate(
        [jnp.full((n,), i, jnp.int32) for i, n in enumerate(nodes_per_graph)])
    edge_graph = jnp.concatenate(
        [jnp.full((m,), i, jnp.int32) for i, m in enumerate(edges_per_graph)])
    block = (node_graph[:, None] == edge_graph[None, :]).astype(jnp.float32)   # (V, E)

    H = block * jax.random.bernoulli(k1, 0.6, (V, E)).astype(jnp.float32)      # incidence
    deg_v = H.sum(axis=1)
    deg_e = H.sum(axis=0)
    dv = jnp.where(deg_v > 0, 1.0 / jnp.maximum(deg_v, 1.0), 0.0).reshape(V, 1)
    de = jnp.where(deg_e > 0, 1.0 / jnp.maximum(deg_e, 1.0), 0.0).reshape(E, 1)

    eb = (edge_graph[:, None] == edge_graph[None, :]).astype(jnp.float32)      # (E, E)
    S = eb * (0.6 * jnp.eye(E) + 0.2 * jax.random.uniform(k2, (E, E)))         # sent_mat

    tf_idf = jax.random.uniform(k3, (V, 2), jnp.float32)
    x_ids = jax.random.randint(k4, (V,), 1, vocab)
    targets = jnp.arange(B, dtype=jnp.int32) % 3
    return x_ids, H, dv, de, S, tf_idf, targets


# -----------------------------------------------------------------------------
if __name__ == "__main__":
    VOCAB = 20
    INPUT_DIM = 16
    HIDDEN_DIM = 32
    NUM_CLASSES = 3
    NUM_LAYERS = 3
    NODES_PER_GRAPH = (5, 6)
    EDGES_PER_GRAPH = (3, 4)

    key = jax.random.PRNGKey(0)
    kp, kd = jax.random.split(key)
    params = init_params(kp, VOCAB, INPUT_DIM, HIDDEN_DIM, NUM_CLASSES, NUM_LAYERS)

    x_ids, H, dv, de, S, tf_idf, targets = make_synthetic_batch(
        kd, NODES_PER_GRAPH, EDGES_PER_GRAPH, VOCAB)

    pred, tgt, pooled_h_ls = hgnn_forward(
        params, x_ids, H, dv, de, S, tf_idf, targets,
        nodes_per_graph=NODES_PER_GRAPH,
        num_layers=NUM_LAYERS, num_classes=NUM_CLASSES)

    jax.block_until_ready((pred, tgt, pooled_h_ls))
    assert pred.shape == (len(NODES_PER_GRAPH), NUM_CLASSES)
    assert pooled_h_ls.shape == (len(NODES_PER_GRAPH),
                                 2 * INPUT_DIM + 2 * HIDDEN_DIM * (NUM_LAYERS - 1))
    assert not bool(jnp.isnan(pred).any())
    assert not bool(jnp.isnan(pooled_h_ls).any())
    print("KERNEL_OK")
</pallas_src>

<mosaic_0001>
module attributes {stable_mosaic.version = 11 : i64} {
  func.func @_fused_forward_kernel(%arg0: i32, %arg1: memref<16x16xbf16, #tpu.memory_space<vmem>>, %arg2: memref<16x16xbf16, #tpu.memory_space<vmem>>, %arg3: memref<16x16xbf16, #tpu.memory_space<vmem>>, %arg4: memref<16x16xf32, #tpu.memory_space<vmem>>, %arg5: memref<16x3xf32, #tpu.memory_space<vmem>>, %arg6: memref<16x32xbf16, #tpu.memory_space<vmem>>, %arg7: memref<32x32xbf16, #tpu.memory_space<vmem>>, %arg8: memref<1x32xf32, #tpu.memory_space<vmem>>, %arg9: memref<1x32xf32, #tpu.memory_space<vmem>>, %arg10: memref<16x1xf32, #tpu.memory_space<vmem>>, %arg11: memref<32x1xf32, #tpu.memory_space<vmem>>, %arg12: memref<32x1xf32, #tpu.memory_space<vmem>>, %arg13: memref<3x1xf32, #tpu.memory_space<vmem>>, %arg14: memref<3x1xf32, #tpu.memory_space<vmem>>, %arg15: memref<3x1xf32, #tpu.memory_space<vmem>>, %arg16: memref<32x128xbf16, #tpu.memory_space<vmem>>, %arg17: memref<64x128xbf16, #tpu.memory_space<vmem>>, %arg18: memref<64x128xbf16, #tpu.memory_space<vmem>>, %arg19: memref<1x128xf32, #tpu.memory_space<vmem>>, %arg20: memref<2x128xf32, #tpu.memory_space<vmem>>, %arg21: memref<2x256xf32, #tpu.memory_space<vmem>>) attributes {dimension_semantics = [#tpu.dimension_semantics<arbitrary>], iteration_bounds = array<i64: 1>, scalar_prefetch = 0 : i64, scratch_operands = 0 : i64, tpu.core_type = #tpu.core_type<tc>, window_params = [{pipeline_mode = #tpu.pipeline_mode<synchronous>, transform_indices = @transform_0, window_bounds = array<i64: 16, 16>}, {pipeline_mode = #tpu.pipeline_mode<synchronous>, transform_indices = @transform_1, window_bounds = array<i64: 16, 16>}, {pipeline_mode = #tpu.pipeline_mode<synchronous>, transform_indices = @transform_2, window_bounds = array<i64: 16, 16>}, {pipeline_mode = #tpu.pipeline_mode<synchronous>, transform_indices = @transform_3, window_bounds = array<i64: 16, 16>}, {pipeline_mode = #tpu.pipeline_mode<synchronous>, transform_indices = @transform_4, window_bounds = array<i64: 16, 3>}, {pipeline_mode = #tpu.pipeline_mode<synchronous>, transform_indices = @transform_5, window_bounds = array<i64: 16, 32>}, {pipeline_mode = #tpu.pipeline_mode<synchronous>, transform_indices = @transform_6, window_bounds = array<i64: 32, 32>}, {pipeline_mode = #tpu.pipeline_mode<synchronous>, transform_indices = @transform_7, window_bounds = array<i64: 1, 32>}, {pipeline_mode = #tpu.pipeline_mode<synchronous>, transform_indices = @transform_8, window_bounds = array<i64: 1, 32>}, {pipeline_mode = #tpu.pipeline_mode<synchronous>, transform_indices = @transform_9, window_bounds = array<i64: 16, 1>}, {pipeline_mode = #tpu.pipeline_mode<synchronous>, transform_indices = @transform_10, window_bounds = array<i64: 32, 1>}, {pipeline_mode = #tpu.pipeline_mode<synchronous>, transform_indices = @transform_11, window_bounds = array<i64: 32, 1>}, {pipeline_mode = #tpu.pipeline_mode<synchronous>, transform_indices = @transform_12, window_bounds = array<i64: 3, 1>}, {pipeline_mode = #tpu.pipeline_mode<synchronous>, transform_indices = @transform_13, window_bounds = array<i64: 3, 1>}, {pipeline_mode = #tpu.pipeline_mode<synchronous>, transform_indices = @transform_14, window_bounds = array<i64: 3, 1>}, {pipeline_mode = #tpu.pipeline_mode<synchronous>, transform_indices = @transform_15, window_bounds = array<i64: 32, 128>}, {pipeline_mode = #tpu.pipeline_mode<synchronous>, transform_indices = @transform_16, window_bounds = array<i64: 64, 128>}, {pipeline_mode = #tpu.pipeline_mode<synchronous>, transform_indices = @transform_17, window_bounds = array<i64: 64, 128>}, {pipeline_mode = #tpu.pipeline_mode<synchronous>, transform_indices = @transform_18, window_bounds = array<i64: 1, 128>}, {pipeline_mode = #tpu.pipeline_mode<synchronous>, transform_indices = @transform_19, window_bounds = array<i64: 2, 128>}, {pipeline_mode = #tpu.pipeline_mode<synchronous>, transform_indices = @transform_20, window_bounds = array<i64: 2, 256>}]} {
    %c0 = arith.constant 0 : index
    %c0_0 = arith.constant 0 : index
    %0 = vector.load %arg1[%c0, %c0_0] : memref<16x16xbf16, #tpu.memory_space<vmem>>, vector<16x16xbf16>
    %c0_1 = arith.constant 0 : index
    %c0_2 = arith.constant 0 : index
    %1 = vector.load %arg2[%c0_1, %c0_2] : memref<16x16xbf16, #tpu.memory_space<vmem>>, vector<16x16xbf16>
    %c0_3 = arith.constant 0 : index
    %c0_4 = arith.constant 0 : index
    %2 = vector.load %arg3[%c0_3, %c0_4] : memref<16x16xbf16, #tpu.memory_space<vmem>>, vector<16x16xbf16>
    %c0_5 = arith.constant 0 : index
    %c0_6 = arith.constant 0 : index
    %3 = vector.load %arg5[%c0_5, %c0_6] : memref<16x3xf32, #tpu.memory_space<vmem>>, vector<16x3xf32>
    %c0_7 = arith.constant 0 : index
    %c0_8 = arith.constant 0 : index
    %4 = vector.load %arg4[%c0_7, %c0_8] : memref<16x16xf32, #tpu.memory_space<vmem>>, vector<16x16xf32>
    %5 = arith.truncf %4 : vector<16x16xf32> to vector<16x16xbf16>
    %cst = arith.constant dense<0.000000e+00> : vector<16x16xf32>
    %6 = tpu.matmul %1, %5, %cst {dimension_numbers = #tpu.dot_dimension_numbers<[1], [0], [0], [1], [0, 0, 1, 1], [], []>} : vector<16x16xbf16>, vector<16x16xbf16>, vector<16x16xf32> -> vector<16x16xf32>
    %7 = arith.truncf %6 : vector<16x16xf32> to vector<16x16xbf16>
    %cst_9 = arith.constant dense<0.000000e+00> : vector<16x16xf32>
    %8 = tpu.matmul %2, %7, %cst_9 {dimension_numbers = #tpu.dot_dimension_numbers<[1], [0], [0], [1], [0, 0, 1, 1], [], []>} : vector<16x16xbf16>, vector<16x16xbf16>, vector<16x16xf32> -> vector<16x16xf32>
    %9 = arith.truncf %8 : vector<16x16xf32> to vector<16x16xbf16>
    %cst_10 = arith.constant dense<0.000000e+00> : vector<16x16xf32>
    %10 = tpu.matmul %0, %9, %cst_10 {dimension_numbers = #tpu.dot_dimension_numbers<[1], [0], [0], [1], [0, 0, 1, 1], [], []>} : vector<16x16xbf16>, vector<16x16xbf16>, vector<16x16xf32> -> vector<16x16xf32>
    %11 = arith.truncf %10 : vector<16x16xf32> to vector<16x16xbf16>
    %c0_11 = arith.constant 0 : index
    %c0_12 = arith.constant 0 : index
    %12 = vector.load %arg6[%c0_11, %c0_12] : memref<16x32xbf16, #tpu.memory_space<vmem>>, vector<16x32xbf16>
    %cst_13 = arith.constant dense<0.000000e+00> : vector<16x32xf32>
    %13 = tpu.matmul %11, %12, %cst_13 {dimension_numbers = #tpu.dot_dimension_numbers<[1], [0], [0], [1], [0, 0, 1, 1], [], []>} : vector<16x16xbf16>, vector<16x32xbf16>, vector<16x32xf32> -> vector<16x32xf32>
    %c0_14 = arith.constant 0 : index
    %c0_15 = arith.constant 0 : index
    %14 = vector.load %arg8[%c0_14, %c0_15] : memref<1x32xf32, #tpu.memory_space<vmem>>, vector<1x32xf32>
    %15 = vector.broadcast %14 : vector<1x32xf32> to vector<16x32xf32>
    %16 = arith.addf %13, %15 : vector<16x32xf32>
    %cst_16 = arith.constant 0.000000e+00 : f32
    %17 = vector.broadcast %cst_16 : f32 to vector<16x32xf32>
    %18 = arith.maximumf %16, %17 : vector<16x32xf32>
    %19 = arith.truncf %18 : vector<16x32xf32> to vector<16x32xbf16>
    %cst_17 = arith.constant dense<0.000000e+00> : vector<16x32xf32>
    %20 = tpu.matmul %1, %19, %cst_17 {dimension_numbers = #tpu.dot_dimension_numbers<[1], [0], [0], [1], [0, 0, 1, 1], [], []>} : vector<16x16xbf16>, vector<16x32xbf16>, vector<16x32xf32> -> vector<16x32xf32>
    %21 = arith.truncf %20 : vector<16x32xf32> to vector<16x32xbf16>
    %cst_18 = arith.constant dense<0.000000e+00> : vector<16x32xf32>
    %22 = tpu.matmul %2, %21, %cst_18 {dimension_numbers = #tpu.dot_dimension_numbers<[1], [0], [0], [1], [0, 0, 1, 1], [], []>} : vector<16x16xbf16>, vector<16x32xbf16>, vector<16x32xf32> -> vector<16x32xf32>
    %23 = arith.truncf %22 : vector<16x32xf32> to vector<16x32xbf16>
    %cst_19 = arith.constant dense<0.000000e+00> : vector<16x32xf32>
    %24 = tpu.matmul %0, %23, %cst_19 {dimension_numbers = #tpu.dot_dimension_numbers<[1], [0], [0], [1], [0, 0, 1, 1], [], []>} : vector<16x16xbf16>, vector<16x32xbf16>, vector<16x32xf32> -> vector<16x32xf32>
    %25 = arith.truncf %24 : vector<16x32xf32> to vector<16x32xbf16>
    %c0_20 = arith.constant 0 : index
    %c0_21 = arith.constant 0 : index
    %26 = vector.load %arg7[%c0_20, %c0_21] : memref<32x32xbf16, #tpu.memory_space<vmem>>, vector<32x32xbf16>
    %cst_22 = arith.constant dense<0.000000e+00> : vector<16x32xf32>
    %27 = tpu.matmul %25, %26, %cst_22 {dimension_numbers = #tpu.dot_dimension_numbers<[1], [0], [0], [1], [0, 0, 1, 1], [], []>} : vector<16x32xbf16>, vector<32x32xbf16>, vector<16x32xf32> -> vector<16x32xf32>
    %c0_23 = arith.constant 0 : index
    %c0_24 = arith.constant 0 : index
    %28 = vector.load %arg9[%c0_23, %c0_24] : memref<1x32xf32, #tpu.memory_space<vmem>>, vector<1x32xf32>
    %29 = vector.broadcast %28 : vector<1x32xf32> to vector<16x32xf32>
    %30 = arith.addf %27, %29 : vector<16x32xf32>
    %cst_25 = arith.constant 0.000000e+00 : f32
    %31 = vector.broadcast %cst_25 : f32 to vector<16x32xf32>
    %32 = arith.maximumf %30, %31 : vector<16x32xf32>
    %cst_26 = arith.constant 0.000000e+00 : f32
    %33 = vector.broadcast %cst_26 : f32 to vector<2x128xf32>
    %c0_27 = arith.constant 0 : index
    %c0_28 = arith.constant 0 : index
    %34 = vector.load %arg19[%c0_27, %c0_28] : memref<1x128xf32, #tpu.memory_space<vmem>>, vector<1x128xf32>
    %35 = vector.broadcast %34 : vector<1x128xf32> to vector<2x128xf32>
    %36 = arith.addf %33, %35 : vector<2x128xf32>
    %c0_29 = arith.constant 0 : index
    %c0_30 = arith.constant 0 : index
    %37 = vector.load %arg10[%c0_29, %c0_30] : memref<16x1xf32, #tpu.memory_space<vmem>>, vector<16x1xf32>
    %cst_31 = arith.constant dense<0.000000e+00> : vector<16x1xf32>
    %38 = tpu.matmul %4, %37, %cst_31 {dimension_numbers = #tpu.dot_dimension_numbers<[1], [0], [0], [1], [0, 0, 1, 1], [], []>} : vector<16x16xf32>, vector<16x1xf32>, vector<16x1xf32> -> vector<16x1xf32>
    %c0_32 = arith.constant 0 : index
    %c0_33 = arith.constant 0 : index
    %39 = vector.load %arg13[%c0_32, %c0_33] : memref<3x1xf32, #tpu.memory_space<vmem>>, vector<3x1xf32>
    %cst_34 = arith.constant dense<0.000000e+00> : vector<16x1xf32>
    %40 = tpu.matmul %3, %39, %cst_34 {dimension_numbers = #tpu.dot_dimension_numbers<[1], [0], [0], [1], [0, 0, 1, 1], [], []>} : vector<16x3xf32>, vector<3x1xf32>, vector<16x1xf32> -> vector<16x1xf32>
    %41 = arith.addf %38, %40 : vector<16x1xf32>
    %42 = vector.extract_strided_slice %41 {offsets = [0, 0], sizes = [5, 1], strides = [1, 1]} : vector<16x1xf32> to vector<5x1xf32>
    %43 = vector.extract_strided_slice %4 {offsets = [0, 0], sizes = [5, 16], strides = [1, 1]} : vector<16x16xf32> to vector<5x16xf32>
    %cst_35 = arith.constant dense<0xFF800000> : vector<1xf32>
    %44 = vector.multi_reduction <maximumf>, %42, %cst_35 [0] : vector<5x1xf32> to vector<1xf32>
    %45 = vector.shape_cast %44 : vector<1xf32> to vector<1x1xf32>
    %46 = vector.broadcast %45 : vector<1x1xf32> to vector<5x1xf32>
    %47 = arith.subf %42, %46 : vector<5x1xf32>
    %48 = math.exp %47 : vector<5x1xf32>
    %cst_36 = arith.constant dense<0.000000e+00> : vector<1xf32>
    %49 = vector.multi_reduction <add>, %48, %cst_36 [0] : vector<5x1xf32> to vector<1xf32>
    %50 = vector.shape_cast %49 : vector<1xf32> to vector<1x1xf32>
    %cst_37 = arith.constant 1.000000e-10 : f32
    %51 = vector.broadcast %cst_37 : f32 to vector<1x1xf32>
    %52 = arith.addf %50, %51 : vector<1x1xf32>
    %53 = vector.broadcast %48 : vector<5x1xf32> to vector<5x16xf32>
    %54 = arith.mulf %53, %43 : vector<5x16xf32>
    %cst_38 = arith.constant dense<0.000000e+00> : vector<16xf32>
    %55 = vector.multi_reduction <add>, %54, %cst_38 [0] : vector<5x16xf32> to vector<16xf32>
    %56 = vector.shape_cast %55 : vector<16xf32> to vector<1x16xf32>
    %57 = vector.broadcast %52 : vector<1x1xf32> to vector<1x16xf32>
    %58 = arith.divf %56, %57 : vector<1x16xf32>
    %cst_39 = arith.constant dense<0xFF800000> : vector<16xf32>
    %59 = vector.multi_reduction <maximumf>, %43, %cst_39 [0] : vector<5x16xf32> to vector<16xf32>
    %60 = vector.shape_cast %59 : vector<16xf32> to vector<1x16xf32>
    %61 = tpu.concatenate %58, %60 in 1 : vector<1x16xf32>, vector<1x16xf32> -> vector<1x32xf32>
    %62 = vector.extract_strided_slice %41 {offsets = [5, 0], sizes = [6, 1], strides = [1, 1]} : vector<16x1xf32> to vector<6x1xf32>
    %63 = vector.extract_strided_slice %4 {offsets = [5, 0], sizes = [6, 16], strides = [1, 1]} : vector<16x16xf32> to vector<6x16xf32>
    %cst_40 = arith.constant dense<0xFF800000> : vector<1xf32>
    %64 = vector.multi_reduction <maximumf>, %62, %cst_40 [0] : vector<6x1xf32> to vector<1xf32>
    %65 = vector.shape_cast %64 : vector<1xf32> to vector<1x1xf32>
    %66 = vector.broadcast %65 : vector<1x1xf32> to vector<6x1xf32>
    %67 = arith.subf %62, %66 : vector<6x1xf32>
    %68 = math.exp %67 : vector<6x1xf32>
    %cst_41 = arith.constant dense<0.000000e+00> : vector<1xf32>
    %69 = vector.multi_reduction <add>, %68, %cst_41 [0] : vector<6x1xf32> to vector<1xf32>
    %70 = vector.shape_cast %69 : vector<1xf32> to vector<1x1xf32>
    %cst_42 = arith.constant 1.000000e-10 : f32
    %71 = vector.broadcast %cst_42 : f32 to vector<1x1xf32>
    %72 = arith.addf %70, %71 : vector<1x1xf32>
    %73 = vector.broadcast %68 : vector<6x1xf32> to vector<6x16xf32>
    %74 = arith.mulf %73, %63 : vector<6x16xf32>
    %cst_43 = arith.constant dense<0.000000e+00> : vector<16xf32>
    %75 = vector.multi_reduction <add>, %74, %cst_43 [0] : vector<6x16xf32> to vector<16xf32>
    %76 = vector.shape_cast %75 : vector<16xf32> to vector<1x16xf32>
    %77 = vector.broadcast %72 : vector<1x1xf32> to vector<1x16xf32>
    %78 = arith.divf %76, %77 : vector<1x16xf32>
    %cst_44 = arith.constant dense<0xFF800000> : vector<16xf32>
    %79 = vector.multi_reduction <maximumf>, %63, %cst_44 [0] : vector<6x16xf32> to vector<16xf32>
    %80 = vector.shape_cast %79 : vector<16xf32> to vector<1x16xf32>
    %81 = tpu.concatenate %78, %80 in 1 : vector<1x16xf32>, vector<1x16xf32> -> vector<1x32xf32>
    %82 = tpu.concatenate %61, %81 in 0 : vector<1x32xf32>, vector<1x32xf32> -> vector<2x32xf32>
    %83 = arith.truncf %82 : vector<2x32xf32> to vector<2x32xbf16>
    %c0_45 = arith.constant 0 : index
    %c0_46 = arith.constant 0 : index
    %84 = vector.load %arg16[%c0_45, %c0_46] : memref<32x128xbf16, #tpu.memory_space<vmem>>, vector<32x128xbf16>
    %cst_47 = arith.constant dense<0.000000e+00> : vector<2x128xf32>
    %85 = tpu.matmul %83, %84, %cst_47 {dimension_numbers = #tpu.dot_dimension_numbers<[1], [0], [0], [1], [0, 0, 1, 1], [], []>} : vector<2x32xbf16>, vector<32x128xbf16>, vector<2x128xf32> -> vector<2x128xf32>
    %86 = arith.addf %36, %85 : vector<2x128xf32>
    %c0_48 = arith.constant 0 : index
    %c0_49 = arith.constant 0 : index
    %87 = vector.load %arg11[%c0_48, %c0_49] : memref<32x1xf32, #tpu.memory_space<vmem>>, vector<32x1xf32>
    %cst_50 = arith.constant dense<0.000000e+00> : vector<16x1xf32>
    %88 = tpu.matmul %18, %87, %cst_50 {dimension_numbers = #tpu.dot_dimension_numbers<[1], [0], [0], [1], [0, 0, 1, 1], [], []>} : vector<16x32xf32>, vector<32x1xf32>, vector<16x1xf32> -> vector<16x1xf32>
    %c0_51 = arith.constant 0 : index
    %c0_52 = arith.constant 0 : index
    %89 = vector.load %arg14[%c0_51, %c0_52] : memref<3x1xf32, #tpu.memory_space<vmem>>, vector<3x1xf32>
    %cst_53 = arith.constant dense<0.000000e+00> : vector<16x1xf32>
    %90 = tpu.matmul %3, %89, %cst_53 {dimension_numbers = #tpu.dot_dimension_numbers<[1], [0], [0], [1], [0, 0, 1, 1], [], []>} : vector<16x3xf32>, vector<3x1xf32>, vector<16x1xf32> -> vector<16x1xf32>
    %91 = arith.addf %88, %90 : vector<16x1xf32>
    %92 = vector.extract_strided_slice %91 {offsets = [0, 0], sizes = [5, 1], strides = [1, 1]} : vector<16x1xf32> to vector<5x1xf32>
    %93 = vector.extract_strided_slice %18 {offsets = [0, 0], sizes = [5, 32], strides = [1, 1]} : vector<16x32xf32> to vector<5x32xf32>
    %cst_54 = arith.constant dense<0xFF800000> : vector<1xf32>
    %94 = vector.multi_reduction <maximumf>, %92, %cst_54 [0] : vector<5x1xf32> to vector<1xf32>
    %95 = vector.shape_cast %94 : vector<1xf32> to vector<1x1xf32>
    %96 = vector.broadcast %95 : vector<1x1xf32> to vector<5x1xf32>
    %97 = arith.subf %92, %96 : vector<5x1xf32>
    %98 = math.exp %97 : vector<5x1xf32>
    %cst_55 = arith.constant dense<0.000000e+00> : vector<1xf32>
    %99 = vector.multi_reduction <add>, %98, %cst_55 [0] : vector<5x1xf32> to vector<1xf32>
    %100 = vector.shape_cast %99 : vector<1xf32> to vector<1x1xf32>
    %cst_56 = arith.constant 1.000000e-10 : f32
    %101 = vector.broadcast %cst_56 : f32 to vector<1x1xf32>
    %102 = arith.addf %100, %101 : vector<1x1xf32>
    %103 = vector.broadcast %98 : vector<5x1xf32> to vector<5x32xf32>
    %104 = arith.mulf %103, %93 : vector<5x32xf32>
    %cst_57 = arith.constant dense<0.000000e+00> : vector<32xf32>
    %105 = vector.multi_reduction <add>, %104, %cst_57 [0] : vector<5x32xf32> to vector<32xf32>
    %106 = vector.shape_cast %105 : vector<32xf32> to vector<1x32xf32>
    %107 = vector.broadcast %102 : vector<1x1xf32> to vector<1x32xf32>
    %108 = arith.divf %106, %107 : vector<1x32xf32>
    %cst_58 = arith.constant dense<0xFF800000> : vector<32xf32>
    %109 = vector.multi_reduction <maximumf>, %93, %cst_58 [0] : vector<5x32xf32> to vector<32xf32>
    %110 = vector.shape_cast %109 : vector<32xf32> to vector<1x32xf32>
    %111 = tpu.concatenate %108, %110 in 1 : vector<1x32xf32>, vector<1x32xf32> -> vector<1x64xf32>
    %112 = vector.extract_strided_slice %91 {offsets = [5, 0], sizes = [6, 1], strides = [1, 1]} : vector<16x1xf32> to vector<6x1xf32>
    %113 = vector.extract_strided_slice %18 {offsets = [5, 0], sizes = [6, 32], strides = [1, 1]} : vector<16x32xf32> to vector<6x32xf32>
    %cst_59 = arith.constant dense<0xFF800000> : vector<1xf32>
    %114 = vector.multi_reduction <maximumf>, %112, %cst_59 [0] : vector<6x1xf32> to vector<1xf32>
    %115 = vector.shape_cast %114 : vector<1xf32> to vector<1x1xf32>
    %116 = vector.broadcast %115 : vector<1x1xf32> to vector<6x1xf32>
    %117 = arith.subf %112, %116 : vector<6x1xf32>
    %118 = math.exp %117 : vector<6x1xf32>
    %cst_60 = arith.constant dense<0.000000e+00> : vector<1xf32>
    %119 = vector.multi_reduction <add>, %118, %cst_60 [0] : vector<6x1xf32> to vector<1xf32>
    %120 = vector.shape_cast %119 : vector<1xf32> to vector<1x1xf32>
    %cst_61 = arith.constant 1.000000e-10 : f32
    %121 = vector.broadcast %cst_61 : f32 to vector<1x1xf32>
    %122 = arith.addf %120, %121 : vector<1x1xf32>
    %123 = vector.broadcast %118 : vector<6x1xf32> to vector<6x32xf32>
    %124 = arith.mulf %123, %113 : vector<6x32xf32>
    %cst_62 = arith.constant dense<0.000000e+00> : vector<32xf32>
    %125 = vector.multi_reduction <add>, %124, %cst_62 [0] : vector<6x32xf32> to vector<32xf32>
    %126 = vector.shape_cast %125 : vector<32xf32> to vector<1x32xf32>
    %127 = vector.broadcast %122 : vector<1x1xf32> to vector<1x32xf32>
    %128 = arith.divf %126, %127 : vector<1x32xf32>
    %cst_63 = arith.constant dense<0xFF800000> : vector<32xf32>
    %129 = vector.multi_reduction <maximumf>, %113, %cst_63 [0] : vector<6x32xf32> to vector<32xf32>
    %130 = vector.shape_cast %129 : vector<32xf32> to vector<1x32xf32>
    %131 = tpu.concatenate %128, %130 in 1 : vector<1x32xf32>, vector<1x32xf32> -> vector<1x64xf32>
    %132 = tpu.concatenate %111, %131 in 0 : vector<1x64xf32>, vector<1x64xf32> -> vector<2x64xf32>
    %133 = arith.truncf %132 : vector<2x64xf32> to vector<2x64xbf16>
    %c0_64 = arith.constant 0 : index
    %c0_65 = arith.constant 0 : index
    %134 = vector.load %arg17[%c0_64, %c0_65] : memref<64x128xbf16, #tpu.memory_space<vmem>>, vector<64x128xbf16>
    %cst_66 = arith.constant dense<0.000000e+00> : vector<2x128xf32>
    %135 = tpu.matmul %133, %134, %cst_66 {dimension_numbers = #tpu.dot_dimension_numbers<[1], [0], [0], [1], [0, 0, 1, 1], [], []>} : vector<2x64xbf16>, vector<64x128xbf16>, vector<2x128xf32> -> vector<2x128xf32>
    %136 = arith.addf %86, %135 : vector<2x128xf32>
    %c0_67 = arith.constant 0 : index
    %c0_68 = arith.constant 0 : index
    %137 = vector.load %arg12[%c0_67, %c0_68] : memref<32x1xf32, #tpu.memory_space<vmem>>, vector<32x1xf32>
    %cst_69 = arith.constant dense<0.000000e+00> : vector<16x1xf32>
    %138 = tpu.matmul %32, %137, %cst_69 {dimension_numbers = #tpu.dot_dimension_numbers<[1], [0], [0], [1], [0, 0, 1, 1], [], []>} : vector<16x32xf32>, vector<32x1xf32>, vector<16x1xf32> -> vector<16x1xf32>
    %c0_70 = arith.constant 0 : index
    %c0_71 = arith.constant 0 : index
    %139 = vector.load %arg15[%c0_70, %c0_71] : memref<3x1xf32, #tpu.memory_space<vmem>>, vector<3x1xf32>
    %cst_72 = arith.constant dense<0.000000e+00> : vector<16x1xf32>
    %140 = tpu.matmul %3, %139, %cst_72 {dimension_numbers = #tpu.dot_dimension_numbers<[1], [0], [0], [1], [0, 0, 1, 1], [], []>} : vector<16x3xf32>, vector<3x1xf32>, vector<16x1xf32> -> vector<16x1xf32>
    %141 = arith.addf %138, %140 : vector<16x1xf32>
    %142 = vector.extract_strided_slice %141 {offsets = [0, 0], sizes = [5, 1], strides = [1, 1]} : vector<16x1xf32> to vector<5x1xf32>
    %143 = vector.extract_strided_slice %32 {offsets = [0, 0], sizes = [5, 32], strides = [1, 1]} : vector<16x32xf32> to vector<5x32xf32>
    %cst_73 = arith.constant dense<0xFF800000> : vector<1xf32>
    %144 = vector.multi_reduction <maximumf>, %142, %cst_73 [0] : vector<5x1xf32> to vector<1xf32>
    %145 = vector.shape_cast %144 : vector<1xf32> to vector<1x1xf32>
    %146 = vector.broadcast %145 : vector<1x1xf32> to vector<5x1xf32>
    %147 = arith.subf %142, %146 : vector<5x1xf32>
    %148 = math.exp %147 : vector<5x1xf32>
    %cst_74 = arith.constant dense<0.000000e+00> : vector<1xf32>
    %149 = vector.multi_reduction <add>, %148, %cst_74 [0] : vector<5x1xf32> to vector<1xf32>
    %150 = vector.shape_cast %149 : vector<1xf32> to vector<1x1xf32>
    %cst_75 = arith.constant 1.000000e-10 : f32
    %151 = vector.broadcast %cst_75 : f32 to vector<1x1xf32>
    %152 = arith.addf %150, %151 : vector<1x1xf32>
    %153 = vector.broadcast %148 : vector<5x1xf32> to vector<5x32xf32>
    %154 = arith.mulf %153, %143 : vector<5x32xf32>
    %cst_76 = arith.constant dense<0.000000e+00> : vector<32xf32>
    %155 = vector.multi_reduction <add>, %154, %cst_76 [0] : vector<5x32xf32> to vector<32xf32>
    %156 = vector.shape_cast %155 : vector<32xf32> to vector<1x32xf32>
    %157 = vector.broadcast %152 : vector<1x1xf32> to vector<1x32xf32>
    %158 = arith.divf %156, %157 : vector<1x32xf32>
    %cst_77 = arith.constant dense<0xFF800000> : vector<32xf32>
    %159 = vector.multi_reduction <maximumf>, %143, %cst_77 [0] : vector<5x32xf32> to vector<32xf32>
    %160 = vector.shape_cast %159 : vector<32xf32> to vector<1x32xf32>
    %161 = tpu.concatenate %158, %160 in 1 : vector<1x32xf32>, vector<1x32xf32> -> vector<1x64xf32>
    %162 = vector.extract_strided_slice %141 {offsets = [5, 0], sizes = [6, 1], strides = [1, 1]} : vector<16x1xf32> to vector<6x1xf32>
    %163 = vector.extract_strided_slice %32 {offsets = [5, 0], sizes = [6, 32], strides = [1, 1]} : vector<16x32xf32> to vector<6x32xf32>
    %cst_78 = arith.constant dense<0xFF800000> : vector<1xf32>
    %164 = vector.multi_reduction <maximumf>, %162, %cst_78 [0] : vector<6x1xf32> to vector<1xf32>
    %165 = vector.shape_cast %164 : vector<1xf32> to vector<1x1xf32>
    %166 = vector.broadcast %165 : vector<1x1xf32> to vector<6x1xf32>
    %167 = arith.subf %162, %166 : vector<6x1xf32>
    %168 = math.exp %167 : vector<6x1xf32>
    %cst_79 = arith.constant dense<0.000000e+00> : vector<1xf32>
    %169 = vector.multi_reduction <add>, %168, %cst_79 [0] : vector<6x1xf32> to vector<1xf32>
    %170 = vector.shape_cast %169 : vector<1xf32> to vector<1x1xf32>
    %cst_80 = arith.constant 1.000000e-10 : f32
    %171 = vector.broadcast %cst_80 : f32 to vector<1x1xf32>
    %172 = arith.addf %170, %171 : vector<1x1xf32>
    %173 = vector.broadcast %168 : vector<6x1xf32> to vector<6x32xf32>
    %174 = arith.mulf %173, %163 : vector<6x32xf32>
    %cst_81 = arith.constant dense<0.000000e+00> : vector<32xf32>
    %175 = vector.multi_reduction <add>, %174, %cst_81 [0] : vector<6x32xf32> to vector<32xf32>
    %176 = vector.shape_cast %175 : vector<32xf32> to vector<1x32xf32>
    %177 = vector.broadcast %172 : vector<1x1xf32> to vector<1x32xf32>
    %178 = arith.divf %176, %177 : vector<1x32xf32>
    %cst_82 = arith.constant dense<0xFF800000> : vector<32xf32>
    %179 = vector.multi_reduction <maximumf>, %163, %cst_82 [0] : vector<6x32xf32> to vector<32xf32>
    %180 = vector.shape_cast %179 : vector<32xf32> to vector<1x32xf32>
    %181 = tpu.concatenate %178, %180 in 1 : vector<1x32xf32>, vector<1x32xf32> -> vector<1x64xf32>
    %182 = tpu.concatenate %161, %181 in 0 : vector<1x64xf32>, vector<1x64xf32> -> vector<2x64xf32>
    %183 = arith.truncf %182 : vector<2x64xf32> to vector<2x64xbf16>
    %c0_83 = arith.constant 0 : index
    %c0_84 = arith.constant 0 : index
    %184 = vector.load %arg18[%c0_83, %c0_84] : memref<64x128xbf16, #tpu.memory_space<vmem>>, vector<64x128xbf16>
    %cst_85 = arith.constant dense<0.000000e+00> : vector<2x128xf32>
    %185 = tpu.matmul %183, %184, %cst_85 {dimension_numbers = #tpu.dot_dimension_numbers<[1], [0], [0], [1], [0, 0, 1, 1], [], []>} : vector<2x64xbf16>, vector<64x128xbf16>, vector<2x128xf32> -> vector<2x128xf32>
    %186 = arith.addf %136, %185 : vector<2x128xf32>
    %c0_86 = arith.constant 0 : index
    %c0_87 = arith.constant 0 : index
    %187 = vector.load %arg20[%c0_86, %c0_87] : memref<2x128xf32, #tpu.memory_space<vmem>>, vector<2x128xf32>
    tpu.vector_store %arg20[%c0_86, %c0_87], %186 {strides = array<i32>} : memref<2x128xf32, #tpu.memory_space<vmem>>, vector<2x128xf32>,
    %cst_88 = arith.constant 0.000000e+00 : f32
    %188 = vector.broadcast %cst_88 : f32 to vector<2x96xf32>
    %189 = tpu.concatenate %82, %132, %182, %188 in 1 : vector<2x32xf32>, vector<2x64xf32>, vector<2x64xf32>, vector<2x96xf32> -> vector<2x256xf32>
    %c0_89 = arith.constant 0 : index
    %c0_90 = arith.constant 0 : index
    %190 = vector.load %arg21[%c0_89, %c0_90] : memref<2x256xf32, #tpu.memory_space<vmem>>, vector<2x256xf32>
    tpu.vector_store %arg21[%c0_89, %c0_90], %189 {strides = array<i32>} : memref<2x256xf32, #tpu.memory_space<vmem>>, vector<2x256xf32>,
    return
  }
  func.func @transform_0(%arg0: i32) -> (i32, i32) {
    %c0_i32 = arith.constant 0 : i32
    %c0_i32_0 = arith.constant 0 : i32
    %c0_i32_1 = arith.constant 0 : i32
    return %c0_i32, %c0_i32_0 : i32, i32
  }
  func.func @transform_1(%arg0: i32) -> (i32, i32) {
    %c0_i32 = arith.constant 0 : i32
    %c0_i32_0 = arith.constant 0 : i32
    %c0_i32_1 = arith.constant 0 : i32
    return %c0_i32, %c0_i32_0 : i32, i32
  }
  func.func @transform_2(%arg0: i32) -> (i32, i32) {
    %c0_i32 = arith.constant 0 : i32
    %c0_i32_0 = arith.constant 0 : i32
    %c0_i32_1 = arith.constant 0 : i32
    return %c0_i32, %c0_i32_0 : i32, i32
  }
  func.func @transform_3(%arg0: i32) -> (i32, i32) {
    %c0_i32 = arith.constant 0 : i32
    %c0_i32_0 = arith.constant 0 : i32
    %c0_i32_1 = arith.constant 0 : i32
    return %c0_i32, %c0_i32_0 : i32, i32
  }
  func.func @transform_4(%arg0: i32) -> (i32, i32) {
    %c0_i32 = arith.constant 0 : i32
    %c0_i32_0 = arith.constant 0 : i32
    %c0_i32_1 = arith.constant 0 : i32
    return %c0_i32, %c0_i32_0 : i32, i32
  }
  func.func @transform_5(%arg0: i32) -> (i32, i32) {
    %c0_i32 = arith.constant 0 : i32
    %c0_i32_0 = arith.constant 0 : i32
    %c0_i32_1 = arith.constant 0 : i32
    return %c0_i32, %c0_i32_0 : i32, i32
  }
  func.func @transform_6(%arg0: i32) -> (i32, i32) {
    %c0_i32 = arith.constant 0 : i32
    %c0_i32_0 = arith.constant 0 : i32
    %c0_i32_1 = arith.constant 0 : i32
    return %c0_i32, %c0_i32_0 : i32, i32
  }
  func.func @transform_7(%arg0: i32) -> (i32, i32) {
    %c0_i32 = arith.constant 0 : i32
    %c0_i32_0 = arith.constant 0 : i32
    %c0_i32_1 = arith.constant 0 : i32
    return %c0_i32, %c0_i32_0 : i32, i32
  }
  func.func @transform_8(%arg0: i32) -> (i32, i32) {
    %c0_i32 = arith.constant 0 : i32
    %c0_i32_0 = arith.constant 0 : i32
    %c0_i32_1 = arith.constant 0 : i32
    return %c0_i32, %c0_i32_0 : i32, i32
  }
  func.func @transform_9(%arg0: i32) -> (i32, i32) {
    %c0_i32 = arith.constant 0 : i32
    %c0_i32_0 = arith.constant 0 : i32
    %c0_i32_1 = arith.constant 0 : i32
    return %c0_i32, %c0_i32_0 : i32, i32
  }
  func.func @transform_10(%arg0: i32) -> (i32, i32) {
    %c0_i32 = arith.constant 0 : i32
    %c0_i32_0 = arith.constant 0 : i32
    %c0_i32_1 = arith.constant 0 : i32
    return %c0_i32, %c0_i32_0 : i32, i32
  }
  func.func @transform_11(%arg0: i32) -> (i32, i32) {
    %c0_i32 = arith.constant 0 : i32
    %c0_i32_0 = arith.constant 0 : i32
    %c0_i32_1 = arith.constant 0 : i32
    return %c0_i32, %c0_i32_0 : i32, i32
  }
  func.func @transform_12(%arg0: i32) -> (i32, i32) {
    %c0_i32 = arith.constant 0 : i32
    %c0_i32_0 = arith.constant 0 : i32
    %c0_i32_1 = arith.constant 0 : i32
    return %c0_i32, %c0_i32_0 : i32, i32
  }
  func.func @transform_13(%arg0: i32) -> (i32, i32) {
    %c0_i32 = arith.constant 0 : i32
    %c0_i32_0 = arith.constant 0 : i32
    %c0_i32_1 = arith.constant 0 : i32
    return %c0_i32, %c0_i32_0 : i32, i32
  }
  func.func @transform_14(%arg0: i32) -> (i32, i32) {
    %c0_i32 = arith.constant 0 : i32
    %c0_i32_0 = arith.constant 0 : i32
    %c0_i32_1 = arith.constant 0 : i32
    return %c0_i32, %c0_i32_0 : i32, i32
  }
  func.func @transform_15(%arg0: i32) -> (i32, i32) {
    %c0_i32 = arith.constant 0 : i32
    %c0_i32_0 = arith.constant 0 : i32
    %c0_i32_1 = arith.constant 0 : i32
    return %c0_i32, %c0_i32_0 : i32, i32
  }
  func.func @transform_16(%arg0: i32) -> (i32, i32) {
    %c0_i32 = arith.constant 0 : i32
    %c0_i32_0 = arith.constant 0 : i32
    %c0_i32_1 = arith.constant 0 : i32
    return %c0_i32, %c0_i32_0 : i32, i32
  }
  func.func @transform_17(%arg0: i32) -> (i32, i32) {
    %c0_i32 = arith.constant 0 : i32
    %c0_i32_0 = arith.constant 0 : i32
    %c0_i32_1 = arith.constant 0 : i32
    return %c0_i32, %c0_i32_0 : i32, i32
  }
  func.func @transform_18(%arg0: i32) -> (i32, i32) {
    %c0_i32 = arith.constant 0 : i32
    %c0_i32_0 = arith.constant 0 : i32
    %c0_i32_1 = arith.constant 0 : i32
    return %c0_i32, %c0_i32_0 : i32, i32
  }
  func.func @transform_19(%arg0: i32) -> (i32, i32) {
    %c0_i32 = arith.constant 0 : i32
    %c0_i32_0 = arith.constant 0 : i32
    %c0_i32_1 = arith.constant 0 : i32
    return %c0_i32, %c0_i32_0 : i32, i32
  }
  func.func @transform_20(%arg0: i32) -> (i32, i32) {
    %c0_i32 = arith.constant 0 : i32
    %c0_i32_0 = arith.constant 0 : i32
    %c0_i32_1 = arith.constant 0 : i32
    return %c0_i32, %c0_i32_0 : i32, i32
  }
}

</mosaic_0001>

<llo_original>
// kernel: tpu_custom_call.1
$region0: #{tpu_custom_call.1}
  #allocation0 [shape = 'u32[]', space=smem, size = 0x4, offset = 0x4, fixed_abs, tag = 'smem constant byte address 0x4 - core index']
  #allocation1 [shape = 'u32[144,128]{1,0:T(1,128)}', space=vmem, size = 0x12000, scoped, tag = 'internal scratch']
  %s0 = inlined_call_operand.hbm [shape: bf16[16,16], index: 0, kind: input, shape index: {}]
  %s1 = inlined_call_operand.vmem [shape: bf16[16,16], index: 1, kind: input, shape index: {}]
  %s2 = inlined_call_operand.hbm [shape: bf16[16,16], index: 2, kind: input, shape index: {}]
  %s3 = inlined_call_operand.vmem [shape: f32[16,16], index: 3, kind: input, shape index: {}]
  %s4 = inlined_call_operand.vmem [shape: f32[16,3], index: 4, kind: input, shape index: {}]
  %s5 = inlined_call_operand.vmem [shape: bf16[16,32], index: 5, kind: input, shape index: {}]
  %s6 = inlined_call_operand.vmem [shape: bf16[32,32], index: 6, kind: input, shape index: {}]
  %s7 = inlined_call_operand.vmem [shape: f32[1,32], index: 7, kind: input, shape index: {}]
  %s8 = inlined_call_operand.vmem [shape: f32[1,32], index: 8, kind: input, shape index: {}]
  %s9 = inlined_call_operand.vmem [shape: f32[16,1], index: 9, kind: input, shape index: {}]
  %s10 = inlined_call_operand.vmem [shape: f32[32,1], index: 10, kind: input, shape index: {}]
  %s11 = inlined_call_operand.vmem [shape: f32[32,1], index: 11, kind: input, shape index: {}]
  %s12 = inlined_call_operand.vmem [shape: f32[3,1], index: 12, kind: input, shape index: {}]
  %s13 = inlined_call_operand.vmem [shape: f32[3,1], index: 13, kind: input, shape index: {}]
  %s14 = inlined_call_operand.vmem [shape: f32[3,1], index: 14, kind: input, shape index: {}]
  %s15 = inlined_call_operand.vmem [shape: bf16[32,128], index: 15, kind: input, shape index: {}]
  %s16 = inlined_call_operand.vmem [shape: bf16[64,128], index: 16, kind: input, shape index: {}]
  %s17 = inlined_call_operand.vmem [shape: bf16[64,128], index: 17, kind: input, shape index: {}]
  %s18 = inlined_call_operand.vmem [shape: f32[1,128], index: 18, kind: input, shape index: {}]
  %s19 = inlined_call_operand.hbm [shape: f32[2,128], index: 19, kind: output, shape index: {0}]
  %s20 = inlined_call_operand.hbm [shape: f32[2,256], index: 20, kind: output, shape index: {1}]
  %21 = xla_tuple %s19, %s20
  %s22 = sld [smem:[#allocation0]]
  $region102: #{tpu_custom_call.1} parent=0
    _
  %s24 = ssub.s32 1, %s22
  %s25 = scalar_select 0, %s24, %s22
  $region1: #{tpu_custom_call.1} parent=0
    #allocation2 [shape = 'u8[4096]{0}', space=vmem, size = 0x1000, scoped, tag = 'input window, operand 0, single buffered']
    #allocation3 [shape = 's32[1]{0}', space=sflag, size = 0x4, scoped, tag = 'scoped memory for tpu_custom_call.1']
    #allocation4 [shape = 's32[1]{0}', space=sflag, size = 0x4, scoped, tag = 'scoped memory for tpu_custom_call.1']
    #allocation5 [shape = 'u8[4096]{0}', space=vmem, size = 0x1000, scoped, tag = 'input window, operand 2, single buffered']
    #allocation6 [shape = 's32[1]{0}', space=sflag, size = 0x4, scoped, tag = 'scoped memory for tpu_custom_call.1']
    #allocation7 [shape = 'u8[1024]{0}', space=vmem, size = 0x400, scoped, tag = 'output window, operand 0, single buffered']
    #allocation8 [shape = 'u8[2048]{0}', space=vmem, size = 0x800, scoped, tag = 'output window, operand 1, single buffered']
    #allocation9 [shape = 's32[1]{0}', space=sflag, size = 0x4, scoped, tag = 'scoped memory for tpu_custom_call.1']
    %26 = vsyncpa [#allocation3], 0
    %27 = vsyncpa [#allocation6], 0
    %28 = vsyncpa [#allocation4], 0
    %29 = vsyncpa [#allocation9], 0
    // Predicated region
    $region2: #{tpu_custom_call.1} parent=1 // pred_check
      _
    $region3: #{tpu_custom_call.1} parent=1 // pred_check_branch
      %31 = sbr.rel (0) target = $region5
    $region4: #{tpu_custom_call.1} parent=1 // pred_region
      %s33 = ssub.s32 128, 128
      %34 = vsyncadd [#allocation3], %s33
      %s35 = sshll.u32 [#allocation2], 4
      %s36 = int_to_ptr.vmem [resolvable:$true] %s35
      %41 = dma.hbm_to_vmem [thread:$0]  %s0, 128, %s36, [#allocation3], 64, 64, 4
    $region5: #{tpu_custom_call.1} parent=1 // pred_fallthru
      _
    // Predicated region
    $region6: #{tpu_custom_call.1} parent=1 // pred_check
      _
    $region7: #{tpu_custom_call.1} parent=1 // pred_check_branch
      %43 = sbr.rel (0) target = $region9
    $region8: #{tpu_custom_call.1} parent=1 // pred_region
      _
    $region9: #{tpu_custom_call.1} parent=1 // pred_fallthru
      _
    // Predicated region
    $region10: #{tpu_custom_call.1} parent=1 // pred_check
      _
    $region11: #{tpu_custom_call.1} parent=1 // pred_check_branch
      %45 = sbr.rel (0) target = $region13
    $region12: #{tpu_custom_call.1} parent=1 // pred_region
      %s47 = ssub.s32 128, 128
      %48 = vsyncadd [#allocation6], %s47
      %s49 = sshll.u32 [#allocation5], 4
      %s50 = int_to_ptr.vmem [resolvable:$true] %s49
      %55 = dma.hbm_to_vmem [thread:$0]  %s2, 128, %s50, [#allocation6], 64, 64, 4
    $region13: #{tpu_custom_call.1} parent=1 // pred_fallthru
      _
    // Predicated region
    $region14: #{tpu_custom_call.1} parent=1 // pred_check
      _
    $region15: #{tpu_custom_call.1} parent=1 // pred_check_branch
      %57 = sbr.rel (0) target = $region17
    $region16: #{tpu_custom_call.1} parent=1 // pred_region
      _
    $region17: #{tpu_custom_call.1} parent=1 // pred_fallthru
      _
    // Predicated region
    $region18: #{tpu_custom_call.1} parent=1 // pred_check
      _
    $region19: #{tpu_custom_call.1} parent=1 // pred_check_branch
      %59 = sbr.rel (0) target = $region21
    $region20: #{tpu_custom_call.1} parent=1 // pred_region
      _
    $region21: #{tpu_custom_call.1} parent=1 // pred_fallthru
      _
    // Predicated region
    $region22: #{tpu_custom_call.1} parent=1 // pred_check
      _
    $region23: #{tpu_custom_call.1} parent=1 // pred_check_branch
      %61 = sbr.rel (0) target = $region25
    $region24: #{tpu_custom_call.1} parent=1 // pred_region
      _
    $region25: #{tpu_custom_call.1} parent=1 // pred_fallthru
      _
    // Predicated region
    $region26: #{tpu_custom_call.1} parent=1 // pred_check
      _
    $region27: #{tpu_custom_call.1} parent=1 // pred_check_branch
      %63 = sbr.rel (0) target = $region29
    $region28: #{tpu_custom_call.1} parent=1 // pred_region
      _
    $region29: #{tpu_custom_call.1} parent=1 // pred_fallthru
      _
    // Predicated region
    $region30: #{tpu_custom_call.1} parent=1 // pred_check
      _
    $region31: #{tpu_custom_call.1} parent=1 // pred_check_branch
      %65 = sbr.rel (0) target = $region33
    $region32: #{tpu_custom_call.1} parent=1 // pred_region
      _
    $region33: #{tpu_custom_call.1} parent=1 // pred_fallthru
      _
    // Predicated region
    $region34: #{tpu_custom_call.1} parent=1 // pred_check
      _
    $region35: #{tpu_custom_call.1} parent=1 // pred_check_branch
      %67 = sbr.rel (0) target = $region37
    $region36: #{tpu_custom_call.1} parent=1 // pred_region
      _
    $region37: #{tpu_custom_call.1} parent=1 // pred_fallthru
      _
    // Predicated region
    $region38: #{tpu_custom_call.1} parent=1 // pred_check
      _
    $region39: #{tpu_custom_call.1} parent=1 // pred_check_branch
      %69 = sbr.rel (0) target = $region41
    $region40: #{tpu_custom_call.1} parent=1 // pred_region
      _
    $region41: #{tpu_custom_call.1} parent=1 // pred_fallthru
      _
    // Predicated region
    $region42: #{tpu_custom_call.1} parent=1 // pred_check
      _
    $region43: #{tpu_custom_call.1} parent=1 // pred_check_branch
      %71 = sbr.rel (0) target = $region45
    $region44: #{tpu_custom_call.1} parent=1 // pred_region
      _
    $region45: #{tpu_custom_call.1} parent=1 // pred_fallthru
      _
    // Predicated region
    $region46: #{tpu_custom_call.1} parent=1 // pred_check
      _
    $region47: #{tpu_custom_call.1} parent=1 // pred_check_branch
      %73 = sbr.rel (0) target = $region49
    $region48: #{tpu_custom_call.1} parent=1 // pred_region
      _
    $region49: #{tpu_custom_call.1} parent=1 // pred_fallthru
      _
    // Predicated region
    $region50: #{tpu_custom_call.1} parent=1 // pred_check
      _
    $region51: #{tpu_custom_call.1} parent=1 // pred_check_branch
      %75 = sbr.rel (0) target = $region53
    $region52: #{tpu_custom_call.1} parent=1 // pred_region
      _
    $region53: #{tpu_custom_call.1} parent=1 // pred_fallthru
      _
    // Predicated region
    $region54: #{tpu_custom_call.1} parent=1 // pred_check
      _
    $region55: #{tpu_custom_call.1} parent=1 // pred_check_branch
      %77 = sbr.rel (0) target = $region57
    $region56: #{tpu_custom_call.1} parent=1 // pred_region
      _
    $region57: #{tpu_custom_call.1} parent=1 // pred_fallthru
      _
    // Predicated region
    $region58: #{tpu_custom_call.1} parent=1 // pred_check
      _
    $region59: #{tpu_custom_call.1} parent=1 // pred_check_branch
      %79 = sbr.rel (0) target = $region61
    $region60: #{tpu_custom_call.1} parent=1 // pred_region
      _
    $region61: #{tpu_custom_call.1} parent=1 // pred_fallthru
      _
    // Predicated region
    $region62: #{tpu_custom_call.1} parent=1 // pred_check
      _
    $region63: #{tpu_custom_call.1} parent=1 // pred_check_branch
      %81 = sbr.rel (0) target = $region65
    $region64: #{tpu_custom_call.1} parent=1 // pred_region
      _
    $region65: #{tpu_custom_call.1} parent=1 // pred_fallthru
      _
    // Predicated region
    $region66: #{tpu_custom_call.1} parent=1 // pred_check
      _
    $region67: #{tpu_custom_call.1} parent=1 // pred_check_branch
      %83 = sbr.rel (0) target = $region69
    $region68: #{tpu_custom_call.1} parent=1 // pred_region
      _
    $region69: #{tpu_custom_call.1} parent=1 // pred_fallthru
      _
    // Predicated region
    $region70: #{tpu_custom_call.1} parent=1 // pred_check
      _
    $region71: #{tpu_custom_call.1} parent=1 // pred_check_branch
      %85 = sbr.rel (0) target = $region73
    $region72: #{tpu_custom_call.1} parent=1 // pred_region
      _
    $region73: #{tpu_custom_call.1} parent=1 // pred_fallthru
      _
    // Predicated region
    $region74: #{tpu_custom_call.1} parent=1 // pred_check
      _
    $region75: #{tpu_custom_call.1} parent=1 // pred_check_branch
      %87 = sbr.rel (0) target = $region77
    $region76: #{tpu_custom_call.1} parent=1 // pred_region
      _
    $region77: #{tpu_custom_call.1} parent=1 // pred_fallthru
      _
    // Predicated region
    $region78: #{tpu_custom_call.1} parent=1 // pred_check
      _
    $region79: #{tpu_custom_call.1} parent=1 // pred_check_branch
      %89 = sbr.rel (0) target = $region81
    $region80: #{tpu_custom_call.1} parent=1 // pred_region
      %90 = dma.done [#allocation3], 128
    $region81: #{tpu_custom_call.1} parent=1 // pred_fallthru
      _
    // Predicated region
    $region82: #{tpu_custom_call.1} parent=1 // pred_check
      _
    $region83: #{tpu_custom_call.1} parent=1 // pred_check_branch
      %92 = sbr.rel (0) target = $region85
    $region84: #{tpu_custom_call.1} parent=1 // pred_region
      %93 = dma.done [#allocation6], 128
    $region85: #{tpu_custom_call.1} parent=1 // pred_fallthru
      _
    %v95 = vld [vmem:[#allocation2] sm:$0xf]
    %v96 = vld [vmem:[#allocation2 + $0x4] sm:$0xf]
    %v97 = vld [vmem:[%s1] sm:$0xf]
    %v98 = vld [vmem:[%s1 + $0x4] sm:$0xf]
    %v99 = vld [vmem:[#allocation5] sm:$0xf]
    %v100 = vld [vmem:[#allocation5 + $0x4] sm:$0xf]
    %v101 = vld [vmem:[%s4] sm:$0xff]
    %v102 = vld [vmem:[%s4 + $0x8] sm:$0xff]
    %v103 = vld [vmem:[%s3] sm:$0xff]
    %v104 = vld [vmem:[%s3 + $0x8] sm:$0xff]
    %v105 = vpack.c.bf16 %v104, %v103
    %v108 = vunpack.c.l.b16 %v97
    %v109 = vunpack.c.l.b16 %v98
    %v110 = vpack.c.b16 %v109, %v108
    %vm111 = vcmask 130048
    %v113 = vsel %vm111, %v110, 0
    %115 = vmatprep.subr.bf16.mxu0 0
    %116 = vmatpush1.bf16.msra.mxu0 %v105
    %117 = vmatprep.subr.bf16.mxu0 0
    %118 = vmatpush1.bf16.msra.mxu0 0
    %119 = vmatprep.subr.bf16.mxu0 0
    %120 = vmatpush1.bf16.msra.mxu0 0
    %121 = vmatprep.subr.bf16.mxu0 0
    %122 = vmatpush1.bf16.msra.mxu0 0
    %123 = vmatprep.subr.bf16.mxu0 0
    %124 = vmatpush1.bf16.msra.mxu0 0
    %125 = vmatprep.subr.bf16.mxu0 0
    %126 = vmatpush1.bf16.msra.mxu0 0
    %127 = vmatprep.subr.bf16.mxu0 0
    %128 = vmatpush1.bf16.msra.mxu0 0
    %129 = vmatprep.subr.bf16.mxu0 0
    %130 = vmatpush1.bf16.msra.mxu0 0
    %131 = vmatprep.subr.bf16.mxu0 0
    %132 = vmatpush1.bf16.msra.mxu0 0
    %133 = vmatprep.subr.bf16.mxu0 0
    %134 = vmatpush1.bf16.msra.mxu0 0
    %135 = vmatprep.subr.bf16.mxu0 0
    %136 = vmatpush1.bf16.msra.mxu0 0
    %137 = vmatprep.subr.bf16.mxu0 0
    %138 = vmatpush1.bf16.msra.mxu0 0
    %139 = vmatprep.subr.bf16.mxu0 0
    %140 = vmatpush1.bf16.msra.mxu0 0
    %141 = vmatprep.subr.bf16.mxu0 0
    %142 = vmatpush1.bf16.msra.mxu0 0
    %143 = vmatprep.subr.bf16.mxu0 0
    %144 = vmatpush1.bf16.msra.mxu0 0
    %145 = vmatprep.subr.bf16.mxu0 0
    %146 = vmatpush1.bf16.msra.mxu0 0
    %147 = vmatprep.mubr.bf16.mxu0 0
    %148 = vmatmul.mubr.bf16.gmra.mrb[0].mxu0 %v113
    %v149 = vpop.f32.mrb[0].mxu0
    %v150 = vadd.f32 0.0, %v149
    %v151 = vpop.f32.mrb[0].mxu0
    %v152 = vpop.f32.mrb[0].mxu0
    %v153 = vadd.f32 0.0, %v152
    %v154 = vpop.f32.mrb[0].mxu0
    %155 = vdwg.mxu0
    %v156 = vpack.c.bf16 %v153, %v150
    %v159 = vunpack.c.l.b16 %v99
    %v160 = vunpack.c.l.b16 %v100
    %v161 = vpack.c.b16 %v160, %v159
    %v163 = vsel %vm111, %v161, 0
    %165 = vmatprep.subr.bf16.mxu0 0
    %166 = vmatpush1.bf16.msra.mxu0 %v156
    %167 = vmatprep.subr.bf16.mxu0 0
    %168 = vmatpush1.bf16.msra.mxu0 0
    %169 = vmatprep.subr.bf16.mxu0 0
    %170 = vmatpush1.bf16.msra.mxu0 0
    %171 = vmatprep.subr.bf16.mxu0 0
    %172 = vmatpush1.bf16.msra.mxu0 0
    %173 = vmatprep.subr.bf16.mxu0 0
    %174 = vmatpush1.bf16.msra.mxu0 0
    %175 = vmatprep.subr.bf16.mxu0 0
    %176 = vmatpush1.bf16.msra.mxu0 0
    %177 = vmatprep.subr.bf16.mxu0 0
    %178 = vmatpush1.bf16.msra.mxu0 0
    %179 = vmatprep.subr.bf16.mxu0 0
    %180 = vmatpush1.bf16.msra.mxu0 0
    %181 = vmatprep.subr.bf16.mxu0 0
    %182 = vmatpush1.bf16.msra.mxu0 0
    %183 = vmatprep.subr.bf16.mxu0 0
    %184 = vmatpush1.bf16.msra.mxu0 0
    %185 = vmatprep.subr.bf16.mxu0 0
    %186 = vmatpush1.bf16.msra.mxu0 0
    %187 = vmatprep.subr.bf16.mxu0 0
    %188 = vmatpush1.bf16.msra.mxu0 0
    %189 = vmatprep.subr.bf16.mxu0 0
    %190 = vmatpush1.bf16.msra.mxu0 0
    %191 = vmatprep.subr.bf16.mxu0 0
    %192 = vmatpush1.bf16.msra.mxu0 0
    %193 = vmatprep.subr.bf16.mxu0 0
    %194 = vmatpush1.bf16.msra.mxu0 0
    %195 = vmatprep.subr.bf16.mxu0 0
    %196 = vmatpush1.bf16.msra.mxu0 0
    %197 = vmatprep.mubr.bf16.mxu0 0
    %198 = vmatmul.mubr.bf16.gmra.mrb[0].mxu0 %v163
    %v199 = vpop.f32.mrb[0].mxu0
    %v200 = vadd.f32 0.0, %v199
    %v201 = vpop.f32.mrb[0].mxu0
    %v202 = vpop.f32.mrb[0].mxu0
    %v203 = vadd.f32 0.0, %v202
    %v204 = vpop.f32.mrb[0].mxu0
    %205 = vdwg.mxu0
    %v206 = vpack.c.bf16 %v203, %v200
    %v209 = vunpack.c.l.b16 %v95
    %v210 = vunpack.c.l.b16 %v96
    %v211 = vpack.c.b16 %v210, %v209
    %v213 = vsel %vm111, %v211, 0
    %215 = vmatprep.subr.bf16.mxu0 0
    %216 = vmatpush1.bf16.msra.mxu0 %v206
    %217 = vmatprep.subr.bf16.mxu0 0
    %218 = vmatpush1.bf16.msra.mxu0 0
    %219 = vmatprep.subr.bf16.mxu0 0
    %220 = vmatpush1.bf16.msra.mxu0 0
    %221 = vmatprep.subr.bf16.mxu0 0
    %222 = vmatpush1.bf16.msra.mxu0 0
    %223 = vmatprep.subr.bf16.mxu0 0
    %224 = vmatpush1.bf16.msra.mxu0 0
    %225 = vmatprep.subr.bf16.mxu0 0
    %226 = vmatpush1.bf16.msra.mxu0 0
    %227 = vmatprep.subr.bf16.mxu0 0
    %228 = vmatpush1.bf16.msra.mxu0 0
    %229 = vmatprep.subr.bf16.mxu0 0
    %230 = vmatpush1.bf16.msra.mxu0 0
    %231 = vmatprep.subr.bf16.mxu0 0
    %232 = vmatpush1.bf16.msra.mxu0 0
    %233 = vmatprep.subr.bf16.mxu0 0
    %234 = vmatpush1.bf16.msra.mxu0 0
    %235 = vmatprep.subr.bf16.mxu0 0
    %236 = vmatpush1.bf16.msra.mxu0 0
    %237 = vmatprep.subr.bf16.mxu0 0
    %238 = vmatpush1.bf16.msra.mxu0 0
    %239 = vmatprep.subr.bf16.mxu0 0
    %240 = vmatpush1.bf16.msra.mxu0 0
    %241 = vmatprep.subr.bf16.mxu0 0
    %242 = vmatpush1.bf16.msra.mxu0 0
    %243 = vmatprep.subr.bf16.mxu0 0
    %244 = vmatpush1.bf16.msra.mxu0 0
    %245 = vmatprep.subr.bf16.mxu0 0
    %246 = vmatpush1.bf16.msra.mxu0 0
    %247 = vmatprep.mubr.bf16.mxu0 0
    %248 = vmatmul.mubr.bf16.gmra.mrb[0].mxu0 %v213
    %v249 = vpop.f32.mrb[0].mxu0
    %v250 = vadd.f32 0.0, %v249
    %v251 = vpop.f32.mrb[0].mxu0
    %v252 = vpop.f32.mrb[0].mxu0
    %v253 = vadd.f32 0.0, %v252
    %v254 = vpop.f32.mrb[0].mxu0
    %255 = vdwg.mxu0
    %v256 = vpack.c.bf16 %v253, %v250
    %v257 = vld [vmem:[%s5] sm:$0xf]
    %v258 = vld [vmem:[%s5 + $0x4] sm:$0xf]
    %v259 = vld [vmem:[%s7] sm:$0x1]
    %v261 = vlaneseq
    %v262 = vshrl.u32 %v261, 7
    %v263 = vsub.s32 0, %v262
    %v264 = vrot.slane %v259, %v263
    %v268 = vunpack.c.l.b16 %v257
    %v269 = vunpack.c.l.b16 %v258
    %v270 = vpack.c.b16 %v269, %v268
    %v273 = vsel %vm111, %v256, 0
    %275 = vmatprep.subr.bf16.mxu0 0
    %276 = vmatpush1.bf16.msra.mxu0 %v270
    %277 = vmatprep.subr.bf16.mxu0 0
    %278 = vmatpush1.bf16.msra.mxu0 0
    %279 = vmatprep.subr.bf16.mxu0 0
    %280 = vmatpush1.bf16.msra.mxu0 0
    %281 = vmatprep.subr.bf16.mxu0 0
    %282 = vmatpush1.bf16.msra.mxu0 0
    %283 = vmatprep.subr.bf16.mxu0 0
    %284 = vmatpush1.bf16.msra.mxu0 0
    %285 = vmatprep.subr.bf16.mxu0 0
    %286 = vmatpush1.bf16.msra.mxu0 0
    %287 = vmatprep.subr.bf16.mxu0 0
    %288 = vmatpush1.bf16.msra.mxu0 0
    %289 = vmatprep.subr.bf16.mxu0 0
    %290 = vmatpush1.bf16.msra.mxu0 0
    %291 = vmatprep.subr.bf16.mxu0 0
    %292 = vmatpush1.bf16.msra.mxu0 0
    %293 = vmatprep.subr.bf16.mxu0 0
    %294 = vmatpush1.bf16.msra.mxu0 0
    %295 = vmatprep.subr.bf16.mxu0 0
    %296 = vmatpush1.bf16.msra.mxu0 0
    %297 = vmatprep.subr.bf16.mxu0 0
    %298 = vmatpush1.bf16.msra.mxu0 0
    %299 = vmatprep.subr.bf16.mxu0 0
    %300 = vmatpush1.bf16.msra.mxu0 0
    %301 = vmatprep.subr.bf16.mxu0 0
    %302 = vmatpush1.bf16.msra.mxu0 0
    %303 = vmatprep.subr.bf16.mxu0 0
    %304 = vmatpush1.bf16.msra.mxu0 0
    %305 = vmatprep.subr.bf16.mxu0 0
    %306 = vmatpush1.bf16.msra.mxu0 0
    %307 = vmatprep.mubr.bf16.mxu0 0
    %308 = vmatmul.mubr.bf16.gmra.mrb[0].mxu0 %v273
    %v309 = vpop.f32.mrb[0].mxu0
    %v310 = vadd.f32 %v264, %v309
    %v311 = vpop.f32.mrb[0].mxu0
    %v312 = vpop.f32.mrb[0].mxu0
    %v313 = vadd.f32 %v264, %v312
    %v314 = vpop.f32.mrb[0].mxu0
    %315 = vdwg.mxu0
    %v316 = vmax.f32 %v310, 0.0
    %v317 = vmax.f32 %v313, 0.0
    %v318 = vpack.c.bf16 %v317, %v316
    %319 = vmatprep.subr.bf16.mxu0 0
    %320 = vmatpush1.bf16.msra.mxu0 %v318
    %321 = vmatprep.subr.bf16.mxu0 0
    %322 = vmatpush1.bf16.msra.mxu0 0
    %323 = vmatprep.subr.bf16.mxu0 0
    %324 = vmatpush1.bf16.msra.mxu0 0
    %325 = vmatprep.subr.bf16.mxu0 0
    %326 = vmatpush1.bf16.msra.mxu0 0
    %327 = vmatprep.subr.bf16.mxu0 0
    %328 = vmatpush1.bf16.msra.mxu0 0
    %329 = vmatprep.subr.bf16.mxu0 0
    %330 = vmatpush1.bf16.msra.mxu0 0
    %331 = vmatprep.subr.bf16.mxu0 0
    %332 = vmatpush1.bf16.msra.mxu0 0
    %333 = vmatprep.subr.bf16.mxu0 0
    %334 = vmatpush1.bf16.msra.mxu0 0
    %335 = vmatprep.subr.bf16.mxu0 0
    %336 = vmatpush1.bf16.msra.mxu0 0
    %337 = vmatprep.subr.bf16.mxu0 0
    %338 = vmatpush1.bf16.msra.mxu0 0
    %339 = vmatprep.subr.bf16.mxu0 0
    %340 = vmatpush1.bf16.msra.mxu0 0
    %341 = vmatprep.subr.bf16.mxu0 0
    %342 = vmatpush1.bf16.msra.mxu0 0
    %343 = vmatprep.subr.bf16.mxu0 0
    %344 = vmatpush1.bf16.msra.mxu0 0
    %345 = vmatprep.subr.bf16.mxu0 0
    %346 = vmatpush1.bf16.msra.mxu0 0
    %347 = vmatprep.subr.bf16.mxu0 0
    %348 = vmatpush1.bf16.msra.mxu0 0
    %349 = vmatprep.subr.bf16.mxu0 0
    %350 = vmatpush1.bf16.msra.mxu0 0
    %351 = vmatprep.mubr.bf16.mxu0 0
    %352 = vmatmul.mubr.bf16.gmra.mrb[0].mxu0 %v113
    %v353 = vpop.f32.mrb[0].mxu0
    %v354 = vadd.f32 0.0, %v353
    %v355 = vpop.f32.mrb[0].mxu0
    %v356 = vpop.f32.mrb[0].mxu0
    %v357 = vadd.f32 0.0, %v356
    %v358 = vpop.f32.mrb[0].mxu0
    %359 = vdwg.mxu0
    %v360 = vpack.c.bf16 %v357, %v354
    %361 = vmatprep.subr.bf16.mxu0 0
    %362 = vmatpush1.bf16.msra.mxu0 %v360
    %363 = vmatprep.subr.bf16.mxu0 0
    %364 = vmatpush1.bf16.msra.mxu0 0
    %365 = vmatprep.subr.bf16.mxu0 0
    %366 = vmatpush1.bf16.msra.mxu0 0
    %367 = vmatprep.subr.bf16.mxu0 0
    %368 = vmatpush1.bf16.msra.mxu0 0
    %369 = vmatprep.subr.bf16.mxu0 0
    %370 = vmatpush1.bf16.msra.mxu0 0
    %371 = vmatprep.subr.bf16.mxu0 0
    %372 = vmatpush1.bf16.msra.mxu0 0
    %373 = vmatprep.subr.bf16.mxu0 0
    %374 = vmatpush1.bf16.msra.mxu0 0
    %375 = vmatprep.subr.bf16.mxu0 0
    %376 = vmatpush1.bf16.msra.mxu0 0
    %377 = vmatprep.subr.bf16.mxu0 0
    %378 = vmatpush1.bf16.msra.mxu0 0
    %379 = vmatprep.subr.bf16.mxu0 0
    %380 = vmatpush1.bf16.msra.mxu0 0
    %381 = vmatprep.subr.bf16.mxu0 0
    %382 = vmatpush1.bf16.msra.mxu0 0
    %383 = vmatprep.subr.bf16.mxu0 0
    %384 = vmatpush1.bf16.msra.mxu0 0
    %385 = vmatprep.subr.bf16.mxu0 0
    %386 = vmatpush1.bf16.msra.mxu0 0
    %387 = vmatprep.subr.bf16.mxu0 0
    %388 = vmatpush1.bf16.msra.mxu0 0
    %389 = vmatprep.subr.bf16.mxu0 0
    %390 = vmatpush1.bf16.msra.mxu0 0
    %391 = vmatprep.subr.bf16.mxu0 0
    %392 = vmatpush1.bf16.msra.mxu0 0
    %393 = vmatprep.mubr.bf16.mxu0 0
    %394 = vmatmul.mubr.bf16.gmra.mrb[0].mxu0 %v163
    %v395 = vpop.f32.mrb[0].mxu0
    %v396 = vadd.f32 0.0, %v395
    %v397 = vpop.f32.mrb[0].mxu0
    %v398 = vpop.f32.mrb[0].mxu0
    %v399 = vadd.f32 0.0, %v398
    %v400 = vpop.f32.mrb[0].mxu0
    %401 = vdwg.mxu0
    %v402 = vpack.c.bf16 %v399, %v396
    %403 = vmatprep.subr.bf16.mxu0 0
    %404 = vmatpush1.bf16.msra.mxu0 %v402
    %405 = vmatprep.subr.bf16.mxu0 0
    %406 = vmatpush1.bf16.msra.mxu0 0
    %407 = vmatprep.subr.bf16.mxu0 0
    %408 = vmatpush1.bf16.msra.mxu0 0
    %409 = vmatprep.subr.bf16.mxu0 0
    %410 = vmatpush1.bf16.msra.mxu0 0
    %411 = vmatprep.subr.bf16.mxu0 0
    %412 = vmatpush1.bf16.msra.mxu0 0
    %413 = vmatprep.subr.bf16.mxu0 0
    %414 = vmatpush1.bf16.msra.mxu0 0
    %415 = vmatprep.subr.bf16.mxu0 0
    %416 = vmatpush1.bf16.msra.mxu0 0
    %417 = vmatprep.subr.bf16.mxu0 0
    %418 = vmatpush1.bf16.msra.mxu0 0
    %419 = vmatprep.subr.bf16.mxu0 0
    %420 = vmatpush1.bf16.msra.mxu0 0
    %421 = vmatprep.subr.bf16.mxu0 0
    %422 = vmatpush1.bf16.msra.mxu0 0
    %423 = vmatprep.subr.bf16.mxu0 0
    %424 = vmatpush1.bf16.msra.mxu0 0
    %425 = vmatprep.subr.bf16.mxu0 0
    %426 = vmatpush1.bf16.msra.mxu0 0
    %427 = vmatprep.subr.bf16.mxu0 0
    %428 = vmatpush1.bf16.msra.mxu0 0
    %429 = vmatprep.subr.bf16.mxu0 0
    %430 = vmatpush1.bf16.msra.mxu0 0
    %431 = vmatprep.subr.bf16.mxu0 0
    %432 = vmatpush1.bf16.msra.mxu0 0
    %433 = vmatprep.subr.bf16.mxu0 0
    %434 = vmatpush1.bf16.msra.mxu0 0
    %435 = vmatprep.mubr.bf16.mxu0 0
    %436 = vmatmul.mubr.bf16.gmra.mrb[0].mxu0 %v213
    %v437 = vpop.f32.mrb[0].mxu0
    %v438 = vadd.f32 0.0, %v437
    %v439 = vpop.f32.mrb[0].mxu0
    %v440 = vpop.f32.mrb[0].mxu0
    %v441 = vadd.f32 0.0, %v440
    %v442 = vpop.f32.mrb[0].mxu0
    %443 = vdwg.mxu0
    %v444 = vpack.c.bf16 %v441, %v438
    %v445 = vld [vmem:[%s6] sm:$0xf]
    %v446 = vld [vmem:[%s6 + $0x4] sm:$0xf]
    %v447 = vld [vmem:[%s6 + $0x8] sm:$0xf]
    %v448 = vld [vmem:[%s6 + $0xc] sm:$0xf]
    %v449 = vld [vmem:[%s8] sm:$0x1]
    %v451 = vlaneseq
    %v452 = vshrl.u32 %v451, 7
    %v453 = vsub.s32 0, %v452
    %v454 = vrot.slane %v449, %v453
    %v460 = vunpack.c.l.b16 %v445
    %v461 = vunpack.c.l.b16 %v446
    %v462 = vunpack.c.l.b16 %v447
    %v463 = vunpack.c.l.b16 %v448
    %v464 = vpack.c.b16 %v461, %v460
    %v465 = vpack.c.b16 %v463, %v462
    %vm468 = vcmask 261120
    %v470 = vsel %vm468, %v444, 0
    %472 = vmatprep.subr.bf16.mxu0 0
    %473 = vmatpush1.bf16.msra.mxu0 %v464
    %474 = vmatprep.subr.bf16.mxu0 0
    %475 = vmatpush1.bf16.msra.mxu0 %v465
    %476 = vmatprep.subr.bf16.mxu0 0
    %477 = vmatpush1.bf16.msra.mxu0 0
    %478 = vmatprep.subr.bf16.mxu0 0
    %479 = vmatpush1.bf16.msra.mxu0 0
    %480 = vmatprep.subr.bf16.mxu0 0
    %481 = vmatpush1.bf16.msra.mxu0 0
    %482 = vmatprep.subr.bf16.mxu0 0
    %483 = vmatpush1.bf16.msra.mxu0 0
    %484 = vmatprep.subr.bf16.mxu0 0
    %485 = vmatpush1.bf16.msra.mxu0 0
    %486 = vmatprep.subr.bf16.mxu0 0
    %487 = vmatpush1.bf16.msra.mxu0 0
    %488 = vmatprep.subr.bf16.mxu0 0
    %489 = vmatpush1.bf16.msra.mxu0 0
    %490 = vmatprep.subr.bf16.mxu0 0
    %491 = vmatpush1.bf16.msra.mxu0 0
    %492 = vmatprep.subr.bf16.mxu0 0
    %493 = vmatpush1.bf16.msra.mxu0 0
    %494 = vmatprep.subr.bf16.mxu0 0
    %495 = vmatpush1.bf16.msra.mxu0 0
    %496 = vmatprep.subr.bf16.mxu0 0
    %497 = vmatpush1.bf16.msra.mxu0 0
    %498 = vmatprep.subr.bf16.mxu0 0
    %499 = vmatpush1.bf16.msra.mxu0 0
    %500 = vmatprep.subr.bf16.mxu0 0
    %501 = vmatpush1.bf16.msra.mxu0 0
    %502 = vmatprep.subr.bf16.mxu0 0
    %503 = vmatpush1.bf16.msra.mxu0 0
    %504 = vmatprep.mubr.bf16.mxu0 0
    %505 = vmatmul.mubr.bf16.gmra.mrb[0].mxu0 %v470
    %v506 = vpop.f32.mrb[0].mxu0
    %v507 = vadd.f32 %v454, %v506
    %v508 = vpop.f32.mrb[0].mxu0
    %v509 = vpop.f32.mrb[0].mxu0
    %v510 = vadd.f32 %v454, %v509
    %v511 = vpop.f32.mrb[0].mxu0
    %512 = vdwg.mxu0
    %v513 = vmax.f32 %v507, 0.0
    %v514 = vmax.f32 %v510, 0.0
    %v515 = vld [vmem:[%s18] sm:$0x1]
    %v517 = vlaneseq
    %v518 = vshrl.u32 %v517, 7
    %v519 = vsub.s32 0, %v518
    %v520 = vrot.slane %v515, %v519
    %v522 = vadd.f32 %v520, 0.0
    %v523 = vld [vmem:[%s9] sm:$0xff]
    %v524 = vld [vmem:[%s9 + $0x8] sm:$0xff]
    %v525 = vld [vmem:[%s12] sm:$0x7]
    %vm526 = vcmask 23552
    %v528 = vsel %vm526, %v101, 0
    %v531 = vsel %vm526, %v102, 0
    %vm533 = vcmask 1042432
    %v535 = vsel %vm533, %v525, 0
    %537 = vmatprep.subr.mxu0 0.0
    %538 = vmatpush1.msra.mxu0 %v535
    %539 = vmatprep.subr.mxu0 0.0
    %540 = vmatpush1.msra.mxu0 0.0
    %541 = vmatprep.subr.mxu0 0.0
    %542 = vmatpush1.msra.mxu0 0.0
    %543 = vmatprep.subr.mxu0 0.0
    %544 = vmatpush1.msra.mxu0 0.0
    %545 = vmatprep.subr.mxu0 0.0
    %546 = vmatpush1.msra.mxu0 0.0
    %547 = vmatprep.subr.mxu0 0.0
    %548 = vmatpush1.msra.mxu0 0.0
    %549 = vmatprep.subr.mxu0 0.0
    %550 = vmatpush1.msra.mxu0 0.0
    %551 = vmatprep.subr.mxu0 0.0
    %552 = vmatpush1.msra.mxu0 0.0
    %553 = vmatprep.subr.mxu0 0.0
    %554 = vmatpush1.msra.mxu0 0.0
    %555 = vmatprep.subr.mxu0 0.0
    %556 = vmatpush1.msra.mxu0 0.0
    %557 = vmatprep.subr.mxu0 0.0
    %558 = vmatpush1.msra.mxu0 0.0
    %559 = vmatprep.subr.mxu0 0.0
    %560 = vmatpush1.msra.mxu0 0.0
    %561 = vmatprep.subr.mxu0 0.0
    %562 = vmatpush1.msra.mxu0 0.0
    %563 = vmatprep.subr.mxu0 0.0
    %564 = vmatpush1.msra.mxu0 0.0
    %565 = vmatprep.subr.mxu0 0.0
    %566 = vmatpush1.msra.mxu0 0.0
    %567 = vmatprep.subr.mxu0 0.0
    %568 = vmatpush1.msra.mxu0 0.0
    %569 = vmatprep.subr.mxu0 0.0
    %570 = vmatpush1.msra.mxu0 0.0
    %571 = vmatprep.subr.mxu0 0.0
    %572 = vmatpush1.msra.mxu0 0.0
    %573 = vmatprep.subr.mxu0 0.0
    %574 = vmatpush1.msra.mxu0 0.0
    %575 = vmatprep.subr.mxu0 0.0
    %576 = vmatpush1.msra.mxu0 0.0
    %577 = vmatprep.subr.mxu0 0.0
    %578 = vmatpush1.msra.mxu0 0.0
    %579 = vmatprep.subr.mxu0 0.0
    %580 = vmatpush1.msra.mxu0 0.0
    %581 = vmatprep.subr.mxu0 0.0
    %582 = vmatpush1.msra.mxu0 0.0
    %583 = vmatprep.subr.mxu0 0.0
    %584 = vmatpush1.msra.mxu0 0.0
    %585 = vmatprep.subr.mxu0 0.0
    %586 = vmatpush1.msra.mxu0 0.0
    %587 = vmatprep.subr.mxu0 0.0
    %588 = vmatpush1.msra.mxu0 0.0
    %589 = vmatprep.subr.mxu0 0.0
    %590 = vmatpush1.msra.mxu0 0.0
    %591 = vmatprep.subr.mxu0 0.0
    %592 = vmatpush1.msra.mxu0 0.0
    %593 = vmatprep.subr.mxu0 0.0
    %594 = vmatpush1.msra.mxu0 0.0
    %595 = vmatprep.subr.mxu0 0.0
    %596 = vmatpush1.msra.mxu0 0.0
    %597 = vmatprep.subr.mxu0 0.0
    %598 = vmatpush1.msra.mxu0 0.0
    %599 = vmatprep.subr.mxu0 0.0
    %600 = vmatpush1.msra.mxu0 0.0
    %601 = vmatprep.mubr.f32.mxu0 0.0
    %602 = vmatmul.mubr.f32.gmra.mrb[0].mxu0 %v528
    %v603 = vpop.f32.mrb[0].mxu0
    %v604 = vadd.f32 0.0, %v603
    %v605 = vpop.f32.mrb[0].mxu0
    %606 = vmatprep.mubr.f32.mxu0 0.0
    %607 = vmatmul.mubr.f32.gmra.mrb[0].mxu0 %v531
    %v608 = vpop.f32.mrb[0].mxu0
    %v609 = vadd.f32 0.0, %v608
    %v610 = vpop.f32.mrb[0].mxu0
    %611 = vdwg.mxu0
    %v613 = vsel %vm111, %v103, 0
    %v616 = vsel %vm111, %v104, 0
    %618 = vmatprep.subr.mxu0 0.0
    %619 = vmatpush1.msra.mxu0 %v523
    %620 = vmatprep.subr.mxu0 0.0
    %621 = vmatpush1.msra.mxu0 %v524
    %622 = vmatprep.subr.mxu0 0.0
    %623 = vmatpush1.msra.mxu0 0.0
    %624 = vmatprep.subr.mxu0 0.0
    %625 = vmatpush1.msra.mxu0 0.0
    %626 = vmatprep.subr.mxu0 0.0
    %627 = vmatpush1.msra.mxu0 0.0
    %628 = vmatprep.subr.mxu0 0.0
    %629 = vmatpush1.msra.mxu0 0.0
    %630 = vmatprep.subr.mxu0 0.0
    %631 = vmatpush1.msra.mxu0 0.0
    %632 = vmatprep.subr.mxu0 0.0
    %633 = vmatpush1.msra.mxu0 0.0
    %634 = vmatprep.subr.mxu0 0.0
    %635 = vmatpush1.msra.mxu0 0.0
    %636 = vmatprep.subr.mxu0 0.0
    %637 = vmatpush1.msra.mxu0 0.0
    %638 = vmatprep.subr.mxu0 0.0
    %639 = vmatpush1.msra.mxu0 0.0
    %640 = vmatprep.subr.mxu0 0.0
    %641 = vmatpush1.msra.mxu0 0.0
    %642 = vmatprep.subr.mxu0 0.0
    %643 = vmatpush1.msra.mxu0 0.0
    %644 = vmatprep.subr.mxu0 0.0
    %645 = vmatpush1.msra.mxu0 0.0
    %646 = vmatprep.subr.mxu0 0.0
    %647 = vmatpush1.msra.mxu0 0.0
    %648 = vmatprep.subr.mxu0 0.0
    %649 = vmatpush1.msra.mxu0 0.0
    %650 = vmatprep.subr.mxu0 0.0
    %651 = vmatpush1.msra.mxu0 0.0
    %652 = vmatprep.subr.mxu0 0.0
    %653 = vmatpush1.msra.mxu0 0.0
    %654 = vmatprep.subr.mxu0 0.0
    %655 = vmatpush1.msra.mxu0 0.0
    %656 = vmatprep.subr.mxu0 0.0
    %657 = vmatpush1.msra.mxu0 0.0
    %658 = vmatprep.subr.mxu0 0.0
    %659 = vmatpush1.msra.mxu0 0.0
    %660 = vmatprep.subr.mxu0 0.0
    %661 = vmatpush1.msra.mxu0 0.0
    %662 = vmatprep.subr.mxu0 0.0
    %663 = vmatpush1.msra.mxu0 0.0
    %664 = vmatprep.subr.mxu0 0.0
    %665 = vmatpush1.msra.mxu0 0.0
    %666 = vmatprep.subr.mxu0 0.0
    %667 = vmatpush1.msra.mxu0 0.0
    %668 = vmatprep.subr.mxu0 0.0
    %669 = vmatpush1.msra.mxu0 0.0
    %670 = vmatprep.subr.mxu0 0.0
    %671 = vmatpush1.msra.mxu0 0.0
    %672 = vmatprep.subr.mxu0 0.0
    %673 = vmatpush1.msra.mxu0 0.0
    %674 = vmatprep.subr.mxu0 0.0
    %675 = vmatpush1.msra.mxu0 0.0
    %676 = vmatprep.subr.mxu0 0.0
    %677 = vmatpush1.msra.mxu0 0.0
    %678 = vmatprep.subr.mxu0 0.0
    %679 = vmatpush1.msra.mxu0 0.0
    %680 = vmatprep.subr.mxu0 0.0
    %681 = vmatpush1.msra.mxu0 0.0
    %682 = vmatprep.mubr.f32.mxu0 0.0
    %683 = vmatmul.mubr.f32.gmra.mrb[0].mxu0 %v613
    %v684 = vpop.f32.mrb[0].mxu0
    %v685 = vadd.f32 %v604, %v684
    %v686 = vpop.f32.mrb[0].mxu0
    %687 = vmatprep.mubr.f32.mxu0 0.0
    %688 = vmatmul.mubr.f32.gmra.mrb[0].mxu0 %v616
    %v689 = vpop.f32.mrb[0].mxu0
    %v690 = vadd.f32 %v609, %v689
    %v691 = vpop.f32.mrb[0].mxu0
    %692 = vdwg.mxu0
    %vm693 = vcmask 4096
    %v694 = vsel %vm693, %v685, -inf
    %v695 = vrot.slane %v694, 4
    %v696 = vmax.f32 %v694, %v695
    %v697 = vrot.slane %v696, 2
    %v698 = vmax.f32 %v696, %v697
    %v699 = vrot.slane %v698, 1
    %v700 = vmax.f32 %v698, %v699
    %v701 = vsub.f32 %v685, %v700
    %v702 = vmul.f32 %v701, 1.442695
    %v703 = vpow.pop %v702
    %v704 = vsel %vm693, %v703, 0.0
    %v705 = vrot.slane %v704, 4
    %v706 = vadd.f32 %v704, %v705
    %v707 = vrot.slane %v706, 2
    %v708 = vadd.f32 %v706, %v707
    %v709 = vrot.slane %v708, 1
    %v710 = vadd.f32 %v708, %v709
    %v711 = vadd.f32 %v710, 1e-10
    %713 = vset.pattern.permute.xlu0 0
    %714 = vperm.xlu0 %713, %v703
    %v715 = vpop.permute.xlu0 %714
    %v717 = vmul.f32 %v715, %v103
    %vm718 = vcmask 126976
    %v719 = vsel %vm718, %v717, 0.0
    %v720 = vrot.slane %v719, 4
    %v721 = vadd.f32 %v719, %v720
    %v722 = vrot.slane %v721, 2
    %v723 = vadd.f32 %v721, %v722
    %v724 = vrot.slane %v723, 1
    %v725 = vadd.f32 %v723, %v724
    %727 = vset.pattern.permute.xlu0 0
    %728 = vperm.xlu0 %727, %v711
    %v729 = vpop.permute.xlu0 %728
    %v731 = vrcp.pop %v729
    %v732 = vmul.f32 %v725, %v731
    %v733 = vsel %vm718, %v103, -inf
    %v734 = vrot.slane %v733, 4
    %v735 = vmax.f32 %v733, %v734
    %v736 = vrot.slane %v735, 2
    %v737 = vmax.f32 %v735, %v736
    %v738 = vrot.slane %v737, 1
    %v739 = vmax.f32 %v737, %v738
    %741 = vrot.lane.b32.xlu0 %v739, 16
    %v742 = vpop.permute.xlu0 %741
    %v744 = vsel %vm111, %v732, %v742
    %vm745 = vcmask 7173
    %v746 = vsel %vm745, %v685, -inf
    %vm747 = vcmask 2048
    %v748 = vsel %vm747, %v690, -inf
    %v749 = vmax.f32 %v746, %v748
    %v750 = vrot.slane %v749, 4
    %v751 = vmax.f32 %v749, %v750
    %v752 = vrot.slane %v751, 2
    %v753 = vmax.f32 %v751, %v752
    %v754 = vrot.slane %v753, 1
    %v755 = vmax.f32 %v753, %v754
    %v756 = vsub.f32 %v685, %v755
    %v757 = vsub.f32 %v690, %v755
    %v758 = vmul.f32 %v756, 1.442695
    %v759 = vpow.pop %v758
    %v760 = vmul.f32 %v757, 1.442695
    %v761 = vpow.pop %v760
    %v764 = vrot.slane %v759, 5
    %v765 = vrot.slane %v761, 5
    %v766 = vsel %vm533, %v764, %v765
    %vm768 = vcmask 5120
    %v769 = vsel %vm768, %v766, 0.0
    %v770 = vrot.slane %v769, 4
    %v771 = vadd.f32 %v769, %v770
    %v772 = vrot.slane %v771, 2
    %v773 = vadd.f32 %v771, %v772
    %v774 = vrot.slane %v773, 1
    %v775 = vadd.f32 %v773, %v774
    %v776 = vadd.f32 %v775, 1e-10
    %777 = vset.pattern.permute.xlu0 0
    %778 = vperm.xlu0 %777, %v759
    %v779 = vpop.permute.xlu0 %778
    %781 = vset.pattern.permute.xlu0 0
    %782 = vperm.xlu0 %781, %v761
    %v783 = vpop.permute.xlu0 %782
    %v785 = vmul.f32 %v779, %v103
    %v786 = vmul.f32 %v783, %v104
    %v789 = vrot.slane %v785, 5
    %v790 = vrot.slane %v786, 5
    %v791 = vsel %vm533, %v789, %v790
    %vm793 = vcmask 128000
    %v794 = vsel %vm793, %v791, 0.0
    %v795 = vrot.slane %v794, 4
    %v796 = vadd.f32 %v794, %v795
    %v797 = vrot.slane %v796, 2
    %v798 = vadd.f32 %v796, %v797
    %v799 = vrot.slane %v798, 1
    %v800 = vadd.f32 %v798, %v799
    %802 = vset.pattern.permute.xlu0 0
    %803 = vperm.xlu0 %802, %v776
    %v804 = vpop.permute.xlu0 %803
    %v806 = vrcp.pop %v804
    %v807 = vmul.f32 %v800, %v806
    %vm808 = vcmask 130053
    %v809 = vsel %vm808, %v103, -inf
    %vm810 = vcmask 124928
    %v811 = vsel %vm810, %v104, -inf
    %v812 = vmax.f32 %v809, %v811
    %v813 = vrot.slane %v812, 4
    %v814 = vmax.f32 %v812, %v813
    %v815 = vrot.slane %v814, 2
    %v816 = vmax.f32 %v814, %v815
    %v817 = vrot.slane %v816, 1
    %v818 = vmax.f32 %v816, %v817
    %820 = vrot.lane.b32.xlu0 %v818, 16
    %v821 = vpop.permute.xlu0 %820
    %v823 = vsel %vm111, %v807, %v821
    %v825 = vrot.slane %v823, 7
    %vm827 = vcmask 1040384
    %v828 = vsel %vm827, %v744, %v825
    %v829 = vpack.c.bf16 %v828, %v828
    %v830 = vld [vmem:[%s15] sm:$0xf]
    %v831 = vld [vmem:[%s15 + $0x4] sm:$0xf]
    %v832 = vld [vmem:[%s15 + $0x8] sm:$0xf]
    %v833 = vld [vmem:[%s15 + $0xc] sm:$0xf]
    %v838 = vunpack.c.l.b16 %v830
    %v839 = vunpack.c.l.b16 %v831
    %v840 = vunpack.c.l.b16 %v832
    %v841 = vunpack.c.l.b16 %v833
    %v842 = vpack.c.b16 %v839, %v838
    %v843 = vpack.c.b16 %v841, %v840
    %v847 = vsel %vm468, %v829, 0
    %849 = vmatprep.subr.bf16.mxu0 0
    %850 = vmatpush1.bf16.msra.mxu0 %v842
    %851 = vmatprep.subr.bf16.mxu0 0
    %852 = vmatpush1.bf16.msra.mxu0 %v843
    %853 = vmatprep.subr.bf16.mxu0 0
    %854 = vmatpush1.bf16.msra.mxu0 0
    %855 = vmatprep.subr.bf16.mxu0 0
    %856 = vmatpush1.bf16.msra.mxu0 0
    %857 = vmatprep.subr.bf16.mxu0 0
    %858 = vmatpush1.bf16.msra.mxu0 0
    %859 = vmatprep.subr.bf16.mxu0 0
    %860 = vmatpush1.bf16.msra.mxu0 0
    %861 = vmatprep.subr.bf16.mxu0 0
    %862 = vmatpush1.bf16.msra.mxu0 0
    %863 = vmatprep.subr.bf16.mxu0 0
    %864 = vmatpush1.bf16.msra.mxu0 0
    %865 = vmatprep.subr.bf16.mxu0 0
    %866 = vmatpush1.bf16.msra.mxu0 0
    %867 = vmatprep.subr.bf16.mxu0 0
    %868 = vmatpush1.bf16.msra.mxu0 0
    %869 = vmatprep.subr.bf16.mxu0 0
    %870 = vmatpush1.bf16.msra.mxu0 0
    %871 = vmatprep.subr.bf16.mxu0 0
    %872 = vmatpush1.bf16.msra.mxu0 0
    %873 = vmatprep.subr.bf16.mxu0 0
    %874 = vmatpush1.bf16.msra.mxu0 0
    %875 = vmatprep.subr.bf16.mxu0 0
    %876 = vmatpush1.bf16.msra.mxu0 0
    %877 = vmatprep.subr.bf16.mxu0 0
    %878 = vmatpush1.bf16.msra.mxu0 0
    %879 = vmatprep.subr.bf16.mxu0 0
    %880 = vmatpush1.bf16.msra.mxu0 0
    %881 = vmatprep.mubr.bf16.mxu0 0
    %882 = vmatmul.mubr.bf16.gmra.mrb[0].mxu0 %v847
    %v883 = vpop.f32.mrb[0].mxu0
    %v884 = vadd.f32 0.0, %v883
    %v885 = vpop.f32.mrb[0].mxu0
    %v886 = vpop.f32.mrb[0].mxu0
    %v887 = vpop.f32.mrb[0].mxu0
    %888 = vdwg.mxu0
    %v889 = vadd.f32 %v522, %v884
    %v890 = vld [vmem:[%s10] sm:$0xff]
    %v891 = vld [vmem:[%s10 + $0x8] sm:$0xff]
    %v892 = vld [vmem:[%s10 + $0x10] sm:$0xff]
    %v893 = vld [vmem:[%s10 + $0x18] sm:$0xff]
    %v894 = vld [vmem:[%s13] sm:$0x7]
    %v896 = vsel %vm533, %v894, 0
    %898 = vmatprep.subr.mxu0 0.0
    %899 = vmatpush1.msra.mxu0 %v896
    %900 = vmatprep.subr.mxu0 0.0
    %901 = vmatpush1.msra.mxu0 0.0
    %902 = vmatprep.subr.mxu0 0.0
    %903 = vmatpush1.msra.mxu0 0.0
    %904 = vmatprep.subr.mxu0 0.0
    %905 = vmatpush1.msra.mxu0 0.0
    %906 = vmatprep.subr.mxu0 0.0
    %907 = vmatpush1.msra.mxu0 0.0
    %908 = vmatprep.subr.mxu0 0.0
    %909 = vmatpush1.msra.mxu0 0.0
    %910 = vmatprep.subr.mxu0 0.0
    %911 = vmatpush1.msra.mxu0 0.0
    %912 = vmatprep.subr.mxu0 0.0
    %913 = vmatpush1.msra.mxu0 0.0
    %914 = vmatprep.subr.mxu0 0.0
    %915 = vmatpush1.msra.mxu0 0.0
    %916 = vmatprep.subr.mxu0 0.0
    %917 = vmatpush1.msra.mxu0 0.0
    %918 = vmatprep.subr.mxu0 0.0
    %919 = vmatpush1.msra.mxu0 0.0
    %920 = vmatprep.subr.mxu0 0.0
    %921 = vmatpush1.msra.mxu0 0.0
    %922 = vmatprep.subr.mxu0 0.0
    %923 = vmatpush1.msra.mxu0 0.0
    %924 = vmatprep.subr.mxu0 0.0
    %925 = vmatpush1.msra.mxu0 0.0
    %926 = vmatprep.subr.mxu0 0.0
    %927 = vmatpush1.msra.mxu0 0.0
    %928 = vmatprep.subr.mxu0 0.0
    %929 = vmatpush1.msra.mxu0 0.0
    %930 = vmatprep.subr.mxu0 0.0
    %931 = vmatpush1.msra.mxu0 0.0
    %932 = vmatprep.subr.mxu0 0.0
    %933 = vmatpush1.msra.mxu0 0.0
    %934 = vmatprep.subr.mxu0 0.0
    %935 = vmatpush1.msra.mxu0 0.0
    %936 = vmatprep.subr.mxu0 0.0
    %937 = vmatpush1.msra.mxu0 0.0
    %938 = vmatprep.subr.mxu0 0.0
    %939 = vmatpush1.msra.mxu0 0.0
    %940 = vmatprep.subr.mxu0 0.0
    %941 = vmatpush1.msra.mxu0 0.0
    %942 = vmatprep.subr.mxu0 0.0
    %943 = vmatpush1.msra.mxu0 0.0
    %944 = vmatprep.subr.mxu0 0.0
    %945 = vmatpush1.msra.mxu0 0.0
    %946 = vmatprep.subr.mxu0 0.0
    %947 = vmatpush1.msra.mxu0 0.0
    %948 = vmatprep.subr.mxu0 0.0
    %949 = vmatpush1.msra.mxu0 0.0
    %950 = vmatprep.subr.mxu0 0.0
    %951 = vmatpush1.msra.mxu0 0.0
    %952 = vmatprep.subr.mxu0 0.0
    %953 = vmatpush1.msra.mxu0 0.0
    %954 = vmatprep.subr.mxu0 0.0
    %955 = vmatpush1.msra.mxu0 0.0
    %956 = vmatprep.subr.mxu0 0.0
    %957 = vmatpush1.msra.mxu0 0.0
    %958 = vmatprep.subr.mxu0 0.0
    %959 = vmatpush1.msra.mxu0 0.0
    %960 = vmatprep.subr.mxu0 0.0
    %961 = vmatpush1.msra.mxu0 0.0
    %962 = vmatprep.mubr.f32.mxu0 0.0
    %963 = vmatmul.mubr.f32.gmra.mrb[0].mxu0 %v528
    %v964 = vpop.f32.mrb[0].mxu0
    %v965 = vadd.f32 0.0, %v964
    %v966 = vpop.f32.mrb[0].mxu0
    %967 = vmatprep.mubr.f32.mxu0 0.0
    %968 = vmatmul.mubr.f32.gmra.mrb[0].mxu0 %v531
    %v969 = vpop.f32.mrb[0].mxu0
    %v970 = vadd.f32 0.0, %v969
    %v971 = vpop.f32.mrb[0].mxu0
    %972 = vdwg.mxu0
    %v974 = vsel %vm468, %v316, 0
    %v977 = vsel %vm468, %v317, 0
    %979 = vmatprep.subr.mxu0 0.0
    %980 = vmatpush1.msra.mxu0 %v890
    %981 = vmatprep.subr.mxu0 0.0
    %982 = vmatpush1.msra.mxu0 %v891
    %983 = vmatprep.subr.mxu0 0.0
    %984 = vmatpush1.msra.mxu0 %v892
    %985 = vmatprep.subr.mxu0 0.0
    %986 = vmatpush1.msra.mxu0 %v893
    %987 = vmatprep.subr.mxu0 0.0
    %988 = vmatpush1.msra.mxu0 0.0
    %989 = vmatprep.subr.mxu0 0.0
    %990 = vmatpush1.msra.mxu0 0.0
    %991 = vmatprep.subr.mxu0 0.0
    %992 = vmatpush1.msra.mxu0 0.0
    %993 = vmatprep.subr.mxu0 0.0
    %994 = vmatpush1.msra.mxu0 0.0
    %995 = vmatprep.subr.mxu0 0.0
    %996 = vmatpush1.msra.mxu0 0.0
    %997 = vmatprep.subr.mxu0 0.0
    %998 = vmatpush1.msra.mxu0 0.0
    %999 = vmatprep.subr.mxu0 0.0
    %1000 = vmatpush1.msra.mxu0 0.0
    %1001 = vmatprep.subr.mxu0 0.0
    %1002 = vmatpush1.msra.mxu0 0.0
    %1003 = vmatprep.subr.mxu0 0.0
    %1004 = vmatpush1.msra.mxu0 0.0
    %1005 = vmatprep.subr.mxu0 0.0
    %1006 = vmatpush1.msra.mxu0 0.0
    %1007 = vmatprep.subr.mxu0 0.0
    %1008 = vmatpush1.msra.mxu0 0.0
    %1009 = vmatprep.subr.mxu0 0.0
    %1010 = vmatpush1.msra.mxu0 0.0
    %1011 = vmatprep.subr.mxu0 0.0
    %1012 = vmatpush1.msra.mxu0 0.0
    %1013 = vmatprep.subr.mxu0 0.0
    %1014 = vmatpush1.msra.mxu0 0.0
    %1015 = vmatprep.subr.mxu0 0.0
    %1016 = vmatpush1.msra.mxu0 0.0
    %1017 = vmatprep.subr.mxu0 0.0
    %1018 = vmatpush1.msra.mxu0 0.0
    %1019 = vmatprep.subr.mxu0 0.0
    %1020 = vmatpush1.msra.mxu0 0.0
    %1021 = vmatprep.subr.mxu0 0.0
    %1022 = vmatpush1.msra.mxu0 0.0
    %1023 = vmatprep.subr.mxu0 0.0
    %1024 = vmatpush1.msra.mxu0 0.0
    %1025 = vmatprep.subr.mxu0 0.0
    %1026 = vmatpush1.msra.mxu0 0.0
    %1027 = vmatprep.subr.mxu0 0.0
    %1028 = vmatpush1.msra.mxu0 0.0
    %1029 = vmatprep.subr.mxu0 0.0
    %1030 = vmatpush1.msra.mxu0 0.0
    %1031 = vmatprep.subr.mxu0 0.0
    %1032 = vmatpush1.msra.mxu0 0.0
    %1033 = vmatprep.subr.mxu0 0.0
    %1034 = vmatpush1.msra.mxu0 0.0
    %1035 = vmatprep.subr.mxu0 0.0
    %1036 = vmatpush1.msra.mxu0 0.0
    %1037 = vmatprep.subr.mxu0 0.0
    %1038 = vmatpush1.msra.mxu0 0.0
    %1039 = vmatprep.subr.mxu0 0.0
    %1040 = vmatpush1.msra.mxu0 0.0
    %1041 = vmatprep.subr.mxu0 0.0
    %1042 = vmatpush1.msra.mxu0 0.0
    %1043 = vmatprep.mubr.f32.mxu0 0.0
    %1044 = vmatmul.mubr.f32.gmra.mrb[0].mxu0 %v974
    %v1045 = vpop.f32.mrb[0].mxu0
    %v1046 = vadd.f32 %v965, %v1045
    %v1047 = vpop.f32.mrb[0].mxu0
    %1048 = vmatprep.mubr.f32.mxu0 0.0
    %1049 = vmatmul.mubr.f32.gmra.mrb[0].mxu0 %v977
    %v1050 = vpop.f32.mrb[0].mxu0
    %v1051 = vadd.f32 %v970, %v1050
    %v1052 = vpop.f32.mrb[0].mxu0
    %1053 = vdwg.mxu0
    %v1054 = vsel %vm693, %v1046, -inf
    %v1055 = vrot.slane %v1054, 4
    %v1056 = vmax.f32 %v1054, %v1055
    %v1057 = vrot.slane %v1056, 2
    %v1058 = vmax.f32 %v1056, %v1057
    %v1059 = vrot.slane %v1058, 1
    %v1060 = vmax.f32 %v1058, %v1059
    %v1061 = vsub.f32 %v1046, %v1060
    %v1062 = vmul.f32 %v1061, 1.442695
    %v1063 = vpow.pop %v1062
    %v1064 = vsel %vm693, %v1063, 0.0
    %v1065 = vrot.slane %v1064, 4
    %v1066 = vadd.f32 %v1064, %v1065
    %v1067 = vrot.slane %v1066, 2
    %v1068 = vadd.f32 %v1066, %v1067
    %v1069 = vrot.slane %v1068, 1
    %v1070 = vadd.f32 %v1068, %v1069
    %v1071 = vadd.f32 %v1070, 1e-10
    %1073 = vset.pattern.permute.xlu0 0
    %1074 = vperm.xlu0 %1073, %v1063
    %v1075 = vpop.permute.xlu0 %1074
    %v1077 = vmul.f32 %v1075, %v316
    %vm1078 = vcmask 258048
    %v1079 = vsel %vm1078, %v1077, 0.0
    %v1080 = vrot.slane %v1079, 4
    %v1081 = vadd.f32 %v1079, %v1080
    %v1082 = vrot.slane %v1081, 2
    %v1083 = vadd.f32 %v1081, %v1082
    %v1084 = vrot.slane %v1083, 1
    %v1085 = vadd.f32 %v1083, %v1084
    %1087 = vset.pattern.permute.xlu0 0
    %1088 = vperm.xlu0 %1087, %v1071
    %v1089 = vpop.permute.xlu0 %1088
    %v1091 = vrcp.pop %v1089
    %v1092 = vmul.f32 %v1085, %v1091
    %v1093 = vsel %vm1078, %v316, -inf
    %v1094 = vrot.slane %v1093, 4
    %v1095 = vmax.f32 %v1093, %v1094
    %v1096 = vrot.slane %v1095, 2
    %v1097 = vmax.f32 %v1095, %v1096
    %v1098 = vrot.slane %v1097, 1
    %v1099 = vmax.f32 %v1097, %v1098
    %1101 = vrot.lane.b32.xlu0 %v1099, 32
    %v1102 = vpop.permute.xlu0 %1101
    %v1104 = vsel %vm468, %v1092, %v1102
    %v1105 = vsel %vm745, %v1046, -inf
    %v1106 = vsel %vm747, %v1051, -inf
    %v1107 = vmax.f32 %v1105, %v1106
    %v1108 = vrot.slane %v1107, 4
    %v1109 = vmax.f32 %v1107, %v1108
    %v1110 = vrot.slane %v1109, 2
    %v1111 = vmax.f32 %v1109, %v1110
    %v1112 = vrot.slane %v1111, 1
    %v1113 = vmax.f32 %v1111, %v1112
    %v1114 = vsub.f32 %v1046, %v1113
    %v1115 = vsub.f32 %v1051, %v1113
    %v1116 = vmul.f32 %v1114, 1.442695
    %v1117 = vpow.pop %v1116
    %v1118 = vmul.f32 %v1115, 1.442695
    %v1119 = vpow.pop %v1118
    %v1122 = vrot.slane %v1117, 5
    %v1123 = vrot.slane %v1119, 5
    %v1124 = vsel %vm533, %v1122, %v1123
    %v1126 = vsel %vm768, %v1124, 0.0
    %v1127 = vrot.slane %v1126, 4
    %v1128 = vadd.f32 %v1126, %v1127
    %v1129 = vrot.slane %v1128, 2
    %v1130 = vadd.f32 %v1128, %v1129
    %v1131 = vrot.slane %v1130, 1
    %v1132 = vadd.f32 %v1130, %v1131
    %v1133 = vadd.f32 %v1132, 1e-10
    %1134 = vset.pattern.permute.xlu0 0
    %1135 = vperm.xlu0 %1134, %v1117
    %v1136 = vpop.permute.xlu0 %1135
    %1138 = vset.pattern.permute.xlu0 0
    %1139 = vperm.xlu0 %1138, %v1119
    %v1140 = vpop.permute.xlu0 %1139
    %v1142 = vmul.f32 %v1136, %v316
    %v1143 = vmul.f32 %v1140, %v317
    %v1146 = vrot.slane %v1142, 5
    %v1147 = vrot.slane %v1143, 5
    %v1148 = vsel %vm533, %v1146, %v1147
    %vm1150 = vcmask 259072
    %v1151 = vsel %vm1150, %v1148, 0.0
    %v1152 = vrot.slane %v1151, 4
    %v1153 = vadd.f32 %v1151, %v1152
    %v1154 = vrot.slane %v1153, 2
    %v1155 = vadd.f32 %v1153, %v1154
    %v1156 = vrot.slane %v1155, 1
    %v1157 = vadd.f32 %v1155, %v1156
    %1159 = vset.pattern.permute.xlu0 0
    %1160 = vperm.xlu0 %1159, %v1133
    %v1161 = vpop.permute.xlu0 %1160
    %v1163 = vrcp.pop %v1161
    %v1164 = vmul.f32 %v1157, %v1163
    %vm1165 = vcmask 261125
    %v1166 = vsel %vm1165, %v316, -inf
    %vm1167 = vcmask 256000
    %v1168 = vsel %vm1167, %v317, -inf
    %v1169 = vmax.f32 %v1166, %v1168
    %v1170 = vrot.slane %v1169, 4
    %v1171 = vmax.f32 %v1169, %v1170
    %v1172 = vrot.slane %v1171, 2
    %v1173 = vmax.f32 %v1171, %v1172
    %v1174 = vrot.slane %v1173, 1
    %v1175 = vmax.f32 %v1173, %v1174
    %1177 = vrot.lane.b32.xlu0 %v1175, 32
    %v1178 = vpop.permute.xlu0 %1177
    %v1180 = vsel %vm468, %v1164, %v1178
    %v1182 = vrot.slane %v1180, 7
    %v1184 = vsel %vm827, %v1104, %v1182
    %v1185 = vpack.c.bf16 %v1184, %v1184
    %v1186 = vld [vmem:[%s16] sm:$0xf]
    %v1187 = vld [vmem:[%s16 + $0x4] sm:$0xf]
    %v1188 = vld [vmem:[%s16 + $0x8] sm:$0xf]
    %v1189 = vld [vmem:[%s16 + $0xc] sm:$0xf]
    %v1190 = vld [vmem:[%s16 + $0x10] sm:$0xf]
    %v1191 = vld [vmem:[%s16 + $0x14] sm:$0xf]
    %v1192 = vld [vmem:[%s16 + $0x18] sm:$0xf]
    %v1193 = vld [vmem:[%s16 + $0x1c] sm:$0xf]
    %v1202 = vunpack.c.l.b16 %v1186
    %v1203 = vunpack.c.l.b16 %v1187
    %v1204 = vunpack.c.l.b16 %v1188
    %v1205 = vunpack.c.l.b16 %v1189
    %v1206 = vunpack.c.l.b16 %v1190
    %v1207 = vunpack.c.l.b16 %v1191
    %v1208 = vunpack.c.l.b16 %v1192
    %v1209 = vunpack.c.l.b16 %v1193
    %v1210 = vpack.c.b16 %v1203, %v1202
    %v1211 = vpack.c.b16 %v1205, %v1204
    %v1212 = vpack.c.b16 %v1207, %v1206
    %v1213 = vpack.c.b16 %v1209, %v1208
    %vm1218 = vcmask 523264
    %v1220 = vsel %vm1218, %v1185, 0
    %1222 = vmatprep.subr.bf16.mxu0 0
    %1223 = vmatpush1.bf16.msra.mxu0 %v1210
    %1224 = vmatprep.subr.bf16.mxu0 0
    %1225 = vmatpush1.bf16.msra.mxu0 %v1211
    %1226 = vmatprep.subr.bf16.mxu0 0
    %1227 = vmatpush1.bf16.msra.mxu0 %v1212
    %1228 = vmatprep.subr.bf16.mxu0 0
    %1229 = vmatpush1.bf16.msra.mxu0 %v1213
    %1230 = vmatprep.subr.bf16.mxu0 0
    %1231 = vmatpush1.bf16.msra.mxu0 0
    %1232 = vmatprep.subr.bf16.mxu0 0
    %1233 = vmatpush1.bf16.msra.mxu0 0
    %1234 = vmatprep.subr.bf16.mxu0 0
    %1235 = vmatpush1.bf16.msra.mxu0 0
    %1236 = vmatprep.subr.bf16.mxu0 0
    %1237 = vmatpush1.bf16.msra.mxu0 0
    %1238 = vmatprep.subr.bf16.mxu0 0
    %1239 = vmatpush1.bf16.msra.mxu0 0
    %1240 = vmatprep.subr.bf16.mxu0 0
    %1241 = vmatpush1.bf16.msra.mxu0 0
    %1242 = vmatprep.subr.bf16.mxu0 0
    %1243 = vmatpush1.bf16.msra.mxu0 0
    %1244 = vmatprep.subr.bf16.mxu0 0
    %1245 = vmatpush1.bf16.msra.mxu0 0
    %1246 = vmatprep.subr.bf16.mxu0 0
    %1247 = vmatpush1.bf16.msra.mxu0 0
    %1248 = vmatprep.subr.bf16.mxu0 0
    %1249 = vmatpush1.bf16.msra.mxu0 0
    %1250 = vmatprep.subr.bf16.mxu0 0
    %1251 = vmatpush1.bf16.msra.mxu0 0
    %1252 = vmatprep.subr.bf16.mxu0 0
    %1253 = vmatpush1.bf16.msra.mxu0 0
    %1254 = vmatprep.mubr.bf16.mxu0 0
    %1255 = vmatmul.mubr.bf16.gmra.mrb[0].mxu0 %v1220
    %v1256 = vpop.f32.mrb[0].mxu0
    %v1257 = vadd.f32 0.0, %v1256
    %v1258 = vpop.f32.mrb[0].mxu0
    %v1259 = vpop.f32.mrb[0].mxu0
    %v1260 = vpop.f32.mrb[0].mxu0
    %1261 = vdwg.mxu0
    %v1262 = vadd.f32 %v889, %v1257
    %v1263 = vld [vmem:[%s11] sm:$0xff]
    %v1264 = vld [vmem:[%s11 + $0x8] sm:$0xff]
    %v1265 = vld [vmem:[%s11 + $0x10] sm:$0xff]
    %v1266 = vld [vmem:[%s11 + $0x18] sm:$0xff]
    %v1267 = vld [vmem:[%s14] sm:$0x7]
    %v1269 = vsel %vm533, %v1267, 0
    %1271 = vmatprep.subr.mxu0 0.0
    %1272 = vmatpush1.msra.mxu0 %v1269
    %1273 = vmatprep.subr.mxu0 0.0
    %1274 = vmatpush1.msra.mxu0 0.0
    %1275 = vmatprep.subr.mxu0 0.0
    %1276 = vmatpush1.msra.mxu0 0.0
    %1277 = vmatprep.subr.mxu0 0.0
    %1278 = vmatpush1.msra.mxu0 0.0
    %1279 = vmatprep.subr.mxu0 0.0
    %1280 = vmatpush1.msra.mxu0 0.0
    %1281 = vmatprep.subr.mxu0 0.0
    %1282 = vmatpush1.msra.mxu0 0.0
    %1283 = vmatprep.subr.mxu0 0.0
    %1284 = vmatpush1.msra.mxu0 0.0
    %1285 = vmatprep.subr.mxu0 0.0
    %1286 = vmatpush1.msra.mxu0 0.0
    %1287 = vmatprep.subr.mxu0 0.0
    %1288 = vmatpush1.msra.mxu0 0.0
    %1289 = vmatprep.subr.mxu0 0.0
    %1290 = vmatpush1.msra.mxu0 0.0
    %1291 = vmatprep.subr.mxu0 0.0
    %1292 = vmatpush1.msra.mxu0 0.0
    %1293 = vmatprep.subr.mxu0 0.0
    %1294 = vmatpush1.msra.mxu0 0.0
    %1295 = vmatprep.subr.mxu0 0.0
    %1296 = vmatpush1.msra.mxu0 0.0
    %1297 = vmatprep.subr.mxu0 0.0
    %1298 = vmatpush1.msra.mxu0 0.0
    %1299 = vmatprep.subr.mxu0 0.0
    %1300 = vmatpush1.msra.mxu0 0.0
    %1301 = vmatprep.subr.mxu0 0.0
    %1302 = vmatpush1.msra.mxu0 0.0
    %1303 = vmatprep.subr.mxu0 0.0
    %1304 = vmatpush1.msra.mxu0 0.0
    %1305 = vmatprep.subr.mxu0 0.0
    %1306 = vmatpush1.msra.mxu0 0.0
    %1307 = vmatprep.subr.mxu0 0.0
    %1308 = vmatpush1.msra.mxu0 0.0
    %1309 = vmatprep.subr.mxu0 0.0
    %1310 = vmatpush1.msra.mxu0 0.0
    %1311 = vmatprep.subr.mxu0 0.0
    %1312 = vmatpush1.msra.mxu0 0.0
    %1313 = vmatprep.subr.mxu0 0.0
    %1314 = vmatpush1.msra.mxu0 0.0
    %1315 = vmatprep.subr.mxu0 0.0
    %1316 = vmatpush1.msra.mxu0 0.0
    %1317 = vmatprep.subr.mxu0 0.0
    %1318 = vmatpush1.msra.mxu0 0.0
    %1319 = vmatprep.subr.mxu0 0.0
    %1320 = vmatpush1.msra.mxu0 0.0
    %1321 = vmatprep.subr.mxu0 0.0
    %1322 = vmatpush1.msra.mxu0 0.0
    %1323 = vmatprep.subr.mxu0 0.0
    %1324 = vmatpush1.msra.mxu0 0.0
    %1325 = vmatprep.subr.mxu0 0.0
    %1326 = vmatpush1.msra.mxu0 0.0
    %1327 = vmatprep.subr.mxu0 0.0
    %1328 = vmatpush1.msra.mxu0 0.0
    %1329 = vmatprep.subr.mxu0 0.0
    %1330 = vmatpush1.msra.mxu0 0.0
    %1331 = vmatprep.subr.mxu0 0.0
    %1332 = vmatpush1.msra.mxu0 0.0
    %1333 = vmatprep.subr.mxu0 0.0
    %1334 = vmatpush1.msra.mxu0 0.0
    %1335 = vmatprep.mubr.f32.mxu0 0.0
    %1336 = vmatmul.mubr.f32.gmra.mrb[0].mxu0 %v528
    %v1337 = vpop.f32.mrb[0].mxu0
    %v1338 = vadd.f32 0.0, %v1337
    %v1339 = vpop.f32.mrb[0].mxu0
    %1340 = vmatprep.mubr.f32.mxu0 0.0
    %1341 = vmatmul.mubr.f32.gmra.mrb[0].mxu0 %v531
    %v1342 = vpop.f32.mrb[0].mxu0
    %v1343 = vadd.f32 0.0, %v1342
    %v1344 = vpop.f32.mrb[0].mxu0
    %1345 = vdwg.mxu0
    %v1347 = vsel %vm468, %v513, 0
    %v1350 = vsel %vm468, %v514, 0
    %1352 = vmatprep.subr.mxu0 0.0
    %1353 = vmatpush1.msra.mxu0 %v1263
    %1354 = vmatprep.subr.mxu0 0.0
    %1355 = vmatpush1.msra.mxu0 %v1264
    %1356 = vmatprep.subr.mxu0 0.0
    %1357 = vmatpush1.msra.mxu0 %v1265
    %1358 = vmatprep.subr.mxu0 0.0
    %1359 = vmatpush1.msra.mxu0 %v1266
    %1360 = vmatprep.subr.mxu0 0.0
    %1361 = vmatpush1.msra.mxu0 0.0
    %1362 = vmatprep.subr.mxu0 0.0
    %1363 = vmatpush1.msra.mxu0 0.0
    %1364 = vmatprep.subr.mxu0 0.0
    %1365 = vmatpush1.msra.mxu0 0.0
    %1366 = vmatprep.subr.mxu0 0.0
    %1367 = vmatpush1.msra.mxu0 0.0
    %1368 = vmatprep.subr.mxu0 0.0
    %1369 = vmatpush1.msra.mxu0 0.0
    %1370 = vmatprep.subr.mxu0 0.0
    %1371 = vmatpush1.msra.mxu0 0.0
    %1372 = vmatprep.subr.mxu0 0.0
    %1373 = vmatpush1.msra.mxu0 0.0
    %1374 = vmatprep.subr.mxu0 0.0
    %1375 = vmatpush1.msra.mxu0 0.0
    %1376 = vmatprep.subr.mxu0 0.0
    %1377 = vmatpush1.msra.mxu0 0.0
    %1378 = vmatprep.subr.mxu0 0.0
    %1379 = vmatpush1.msra.mxu0 0.0
    %1380 = vmatprep.subr.mxu0 0.0
    %1381 = vmatpush1.msra.mxu0 0.0
    %1382 = vmatprep.subr.mxu0 0.0
    %1383 = vmatpush1.msra.mxu0 0.0
    %1384 = vmatprep.subr.mxu0 0.0
    %1385 = vmatpush1.msra.mxu0 0.0
    %1386 = vmatprep.subr.mxu0 0.0
    %1387 = vmatpush1.msra.mxu0 0.0
    %1388 = vmatprep.subr.mxu0 0.0
    %1389 = vmatpush1.msra.mxu0 0.0
    %1390 = vmatprep.subr.mxu0 0.0
    %1391 = vmatpush1.msra.mxu0 0.0
    %1392 = vmatprep.subr.mxu0 0.0
    %1393 = vmatpush1.msra.mxu0 0.0
    %1394 = vmatprep.subr.mxu0 0.0
    %1395 = vmatpush1.msra.mxu0 0.0
    %1396 = vmatprep.subr.mxu0 0.0
    %1397 = vmatpush1.msra.mxu0 0.0
    %1398 = vmatprep.subr.mxu0 0.0
    %1399 = vmatpush1.msra.mxu0 0.0
    %1400 = vmatprep.subr.mxu0 0.0
    %1401 = vmatpush1.msra.mxu0 0.0
    %1402 = vmatprep.subr.mxu0 0.0
    %1403 = vmatpush1.msra.mxu0 0.0
    %1404 = vmatprep.subr.mxu0 0.0
    %1405 = vmatpush1.msra.mxu0 0.0
    %1406 = vmatprep.subr.mxu0 0.0
    %1407 = vmatpush1.msra.mxu0 0.0
    %1408 = vmatprep.subr.mxu0 0.0
    %1409 = vmatpush1.msra.mxu0 0.0
    %1410 = vmatprep.subr.mxu0 0.0
    %1411 = vmatpush1.msra.mxu0 0.0
    %1412 = vmatprep.subr.mxu0 0.0
    %1413 = vmatpush1.msra.mxu0 0.0
    %1414 = vmatprep.subr.mxu0 0.0
    %1415 = vmatpush1.msra.mxu0 0.0
    %1416 = vmatprep.mubr.f32.mxu0 0.0
    %1417 = vmatmul.mubr.f32.gmra.mrb[0].mxu0 %v1347
    %v1418 = vpop.f32.mrb[0].mxu0
    %v1419 = vadd.f32 %v1338, %v1418
    %v1420 = vpop.f32.mrb[0].mxu0
    %1421 = vmatprep.mubr.f32.mxu0 0.0
    %1422 = vmatmul.mubr.f32.gmra.mrb[0].mxu0 %v1350
    %v1423 = vpop.f32.mrb[0].mxu0
    %v1424 = vadd.f32 %v1343, %v1423
    %v1425 = vpop.f32.mrb[0].mxu0
    %1426 = vdwg.mxu0
    %v1427 = vsel %vm693, %v1419, -inf
    %v1428 = vrot.slane %v1427, 4
    %v1429 = vmax.f32 %v1427, %v1428
    %v1430 = vrot.slane %v1429, 2
    %v1431 = vmax.f32 %v1429, %v1430
    %v1432 = vrot.slane %v1431, 1
    %v1433 = vmax.f32 %v1431, %v1432
    %v1434 = vsub.f32 %v1419, %v1433
    %v1435 = vmul.f32 %v1434, 1.442695
    %v1436 = vpow.pop %v1435
    %v1437 = vsel %vm693, %v1436, 0.0
    %v1438 = vrot.slane %v1437, 4
    %v1439 = vadd.f32 %v1437, %v1438
    %v1440 = vrot.slane %v1439, 2
    %v1441 = vadd.f32 %v1439, %v1440
    %v1442 = vrot.slane %v1441, 1
    %v1443 = vadd.f32 %v1441, %v1442
    %v1444 = vadd.f32 %v1443, 1e-10
    %1446 = vset.pattern.permute.xlu0 0
    %1447 = vperm.xlu0 %1446, %v1436
    %v1448 = vpop.permute.xlu0 %1447
    %v1450 = vmul.f32 %v1448, %v513
    %v1451 = vsel %vm1078, %v1450, 0.0
    %v1452 = vrot.slane %v1451, 4
    %v1453 = vadd.f32 %v1451, %v1452
    %v1454 = vrot.slane %v1453, 2
    %v1455 = vadd.f32 %v1453, %v1454
    %v1456 = vrot.slane %v1455, 1
    %v1457 = vadd.f32 %v1455, %v1456
    %1459 = vset.pattern.permute.xlu0 0
    %1460 = vperm.xlu0 %1459, %v1444
    %v1461 = vpop.permute.xlu0 %1460
    %v1463 = vrcp.pop %v1461
    %v1464 = vmul.f32 %v1457, %v1463
    %v1465 = vsel %vm1078, %v513, -inf
    %v1466 = vrot.slane %v1465, 4
    %v1467 = vmax.f32 %v1465, %v1466
    %v1468 = vrot.slane %v1467, 2
    %v1469 = vmax.f32 %v1467, %v1468
    %v1470 = vrot.slane %v1469, 1
    %v1471 = vmax.f32 %v1469, %v1470
    %1473 = vrot.lane.b32.xlu0 %v1471, 32
    %v1474 = vpop.permute.xlu0 %1473
    %v1476 = vsel %vm468, %v1464, %v1474
    %v1477 = vsel %vm745, %v1419, -inf
    %v1478 = vsel %vm747, %v1424, -inf
    %v1479 = vmax.f32 %v1477, %v1478
    %v1480 = vrot.slane %v1479, 4
    %v1481 = vmax.f32 %v1479, %v1480
    %v1482 = vrot.slane %v1481, 2
    %v1483 = vmax.f32 %v1481, %v1482
    %v1484 = vrot.slane %v1483, 1
    %v1485 = vmax.f32 %v1483, %v1484
    %v1486 = vsub.f32 %v1419, %v1485
    %v1487 = vsub.f32 %v1424, %v1485
    %v1488 = vmul.f32 %v1486, 1.442695
    %v1489 = vpow.pop %v1488
    %v1490 = vmul.f32 %v1487, 1.442695
    %v1491 = vpow.pop %v1490
    %v1494 = vrot.slane %v1489, 5
    %v1495 = vrot.slane %v1491, 5
    %v1496 = vsel %vm533, %v1494, %v1495
    %v1498 = vsel %vm768, %v1496, 0.0
    %v1499 = vrot.slane %v1498, 4
    %v1500 = vadd.f32 %v1498, %v1499
    %v1501 = vrot.slane %v1500, 2
    %v1502 = vadd.f32 %v1500, %v1501
    %v1503 = vrot.slane %v1502, 1
    %v1504 = vadd.f32 %v1502, %v1503
    %v1505 = vadd.f32 %v1504, 1e-10
    %1506 = vset.pattern.permute.xlu0 0
    %1507 = vperm.xlu0 %1506, %v1489
    %v1508 = vpop.permute.xlu0 %1507
    %1510 = vset.pattern.permute.xlu0 0
    %1511 = vperm.xlu0 %1510, %v1491
    %v1512 = vpop.permute.xlu0 %1511
    %v1514 = vmul.f32 %v1508, %v513
    %v1515 = vmul.f32 %v1512, %v514
    %v1518 = vrot.slane %v1514, 5
    %v1519 = vrot.slane %v1515, 5
    %v1520 = vsel %vm533, %v1518, %v1519
    %v1522 = vsel %vm1150, %v1520, 0.0
    %v1523 = vrot.slane %v1522, 4
    %v1524 = vadd.f32 %v1522, %v1523
    %v1525 = vrot.slane %v1524, 2
    %v1526 = vadd.f32 %v1524, %v1525
    %v1527 = vrot.slane %v1526, 1
    %v1528 = vadd.f32 %v1526, %v1527
    %1530 = vset.pattern.permute.xlu0 0
    %1531 = vperm.xlu0 %1530, %v1505
    %v1532 = vpop.permute.xlu0 %1531
    %v1534 = vrcp.pop %v1532
    %v1535 = vmul.f32 %v1528, %v1534
    %v1536 = vsel %vm1165, %v513, -inf
    %v1537 = vsel %vm1167, %v514, -inf
    %v1538 = vmax.f32 %v1536, %v1537
    %v1539 = vrot.slane %v1538, 4
    %v1540 = vmax.f32 %v1538, %v1539
    %v1541 = vrot.slane %v1540, 2
    %v1542 = vmax.f32 %v1540, %v1541
    %v1543 = vrot.slane %v1542, 1
    %v1544 = vmax.f32 %v1542, %v1543
    %1546 = vrot.lane.b32.xlu0 %v1544, 32
    %v1547 = vpop.permute.xlu0 %1546
    %v1549 = vsel %vm468, %v1535, %v1547
    %v1551 = vrot.slane %v1549, 7
    %v1553 = vsel %vm827, %v1476, %v1551
    %v1554 = vpack.c.bf16 %v1553, %v1553
    %v1555 = vld [vmem:[%s17] sm:$0xf]
    %v1556 = vld [vmem:[%s17 + $0x4] sm:$0xf]
    %v1557 = vld [vmem:[%s17 + $0x8] sm:$0xf]
    %v1558 = vld [vmem:[%s17 + $0xc] sm:$0xf]
    %v1559 = vld [vmem:[%s17 + $0x10] sm:$0xf]
    %v1560 = vld [vmem:[%s17 + $0x14] sm:$0xf]
    %v1561 = vld [vmem:[%s17 + $0x18] sm:$0xf]
    %v1562 = vld [vmem:[%s17 + $0x1c] sm:$0xf]
    %v1571 = vunpack.c.l.b16 %v1555
    %v1572 = vunpack.c.l.b16 %v1556
    %v1573 = vunpack.c.l.b16 %v1557
    %v1574 = vunpack.c.l.b16 %v1558
    %v1575 = vunpack.c.l.b16 %v1559
    %v1576 = vunpack.c.l.b16 %v1560
    %v1577 = vunpack.c.l.b16 %v1561
    %v1578 = vunpack.c.l.b16 %v1562
    %v1579 = vpack.c.b16 %v1572, %v1571
    %v1580 = vpack.c.b16 %v1574, %v1573
    %v1581 = vpack.c.b16 %v1576, %v1575
    %v1582 = vpack.c.b16 %v1578, %v1577
    %v1588 = vsel %vm1218, %v1554, 0
    %1590 = vmatprep.subr.bf16.mxu0 0
    %1591 = vmatpush1.bf16.msra.mxu0 %v1579
    %1592 = vmatprep.subr.bf16.mxu0 0
    %1593 = vmatpush1.bf16.msra.mxu0 %v1580
    %1594 = vmatprep.subr.bf16.mxu0 0
    %1595 = vmatpush1.bf16.msra.mxu0 %v1581
    %1596 = vmatprep.subr.bf16.mxu0 0
    %1597 = vmatpush1.bf16.msra.mxu0 %v1582
    %1598 = vmatprep.subr.bf16.mxu0 0
    %1599 = vmatpush1.bf16.msra.mxu0 0
    %1600 = vmatprep.subr.bf16.mxu0 0
    %1601 = vmatpush1.bf16.msra.mxu0 0
    %1602 = vmatprep.subr.bf16.mxu0 0
    %1603 = vmatpush1.bf16.msra.mxu0 0
    %1604 = vmatprep.subr.bf16.mxu0 0
    %1605 = vmatpush1.bf16.msra.mxu0 0
    %1606 = vmatprep.subr.bf16.mxu0 0
    %1607 = vmatpush1.bf16.msra.mxu0 0
    %1608 = vmatprep.subr.bf16.mxu0 0
    %1609 = vmatpush1.bf16.msra.mxu0 0
    %1610 = vmatprep.subr.bf16.mxu0 0
    %1611 = vmatpush1.bf16.msra.mxu0 0
    %1612 = vmatprep.subr.bf16.mxu0 0
    %1613 = vmatpush1.bf16.msra.mxu0 0
    %1614 = vmatprep.subr.bf16.mxu0 0
    %1615 = vmatpush1.bf16.msra.mxu0 0
    %1616 = vmatprep.subr.bf16.mxu0 0
    %1617 = vmatpush1.bf16.msra.mxu0 0
    %1618 = vmatprep.subr.bf16.mxu0 0
    %1619 = vmatpush1.bf16.msra.mxu0 0
    %1620 = vmatprep.subr.bf16.mxu0 0
    %1621 = vmatpush1.bf16.msra.mxu0 0
    %1622 = vmatprep.mubr.bf16.mxu0 0
    %1623 = vmatmul.mubr.bf16.gmra.mrb[0].mxu0 %v1588
    %v1624 = vpop.f32.mrb[0].mxu0
    %v1625 = vadd.f32 0.0, %v1624
    %v1626 = vpop.f32.mrb[0].mxu0
    %v1627 = vpop.f32.mrb[0].mxu0
    %v1628 = vpop.f32.mrb[0].mxu0
    %1629 = vdwg.mxu0
    %v1630 = vadd.f32 %v1262, %v1625
    %1631 = vst [vmem:[#allocation7] sm:$0x3] %v1630
    %1633 = vrot.lane.b32.xlu0 %v1184, 32
    %v1634 = vpop.permute.xlu0 %1633
    %1637 = vrot.lane.b32.xlu0 %v1553, 96
    %v1638 = vpop.permute.xlu0 %1637
    %v1640 = vsel %vm468, %v828, %v1634
    %vm1641 = vcmask 785408
    %v1642 = vsel %vm1641, %v1640, %v1638
    %v1643 = vsel %vm468, %v1638, 0.0
    %v1646 = vcombine.low %v1642, %v1643
    %v1648 = vunpack.c.l.s4 1983009808
    %v1649 = vunpack.c.0.s8 %v1648
    %v1650 = vlaneseq
    %v1651 = vshrl.u32 %v1650, 7
    %v1652 = vsub.s32 %v1649, %v1651
    %v1653 = vrot.slane %v1646, %v1652
    %1655 = vst [vmem:[#allocation8] sm:$0xf] %v1653
    // Predicated region
    $region86: #{tpu_custom_call.1} parent=1 // pred_check
      _
    $region87: #{tpu_custom_call.1} parent=1 // pred_check_branch
      %1657 = sbr.rel (0) target = $region89
    $region88: #{tpu_custom_call.1} parent=1 // pred_region
      %s1659 = ssub.s32 32, 32
      %1660 = vsyncadd [#allocation4], %s1659
      %s1662 = sshll.u32 [#allocation7], 4
      %s1663 = int_to_ptr.vmem [resolvable:$true] %s1662
      %1665 = dma.vmem_to_hbm [thread:$0]  %s1663, 32, %s19, [#allocation4]
    $region89: #{tpu_custom_call.1} parent=1 // pred_fallthru
      _
    // Predicated region
    $region90: #{tpu_custom_call.1} parent=1 // pred_check
      _
    $region91: #{tpu_custom_call.1} parent=1 // pred_check_branch
      %1667 = sbr.rel (0) target = $region93
    $region92: #{tpu_custom_call.1} parent=1 // pred_region
      %s1669 = ssub.s32 64, 64
      %1670 = vsyncadd [#allocation9], %s1669
      %s1672 = sshll.u32 [#allocation8], 4
      %s1673 = int_to_ptr.vmem [resolvable:$true] %s1672
      %1675 = dma.vmem_to_hbm [thread:$0]  %s1673, 64, %s20, [#allocation9]
    $region93: #{tpu_custom_call.1} parent=1 // pred_fallthru
      _
    // Predicated region
    $region94: #{tpu_custom_call.1} parent=1 // pred_check
      _
    $region95: #{tpu_custom_call.1} parent=1 // pred_check_branch
      %1677 = sbr.rel (0) target = $region97
    $region96: #{tpu_custom_call.1} parent=1 // pred_region
      %1678 = dma.done [#allocation4], 32
    $region97: #{tpu_custom_call.1} parent=1 // pred_fallthru
      _
    // Predicated region
    $region98: #{tpu_custom_call.1} parent=1 // pred_check
      _
    $region99: #{tpu_custom_call.1} parent=1 // pred_check_branch
      %1680 = sbr.rel (0) target = $region101
    $region100: #{tpu_custom_call.1} parent=1 // pred_region
      %1681 = dma.done [#allocation9], 64
    $region101: #{tpu_custom_call.1} parent=1 // pred_fallthru
      _
    %1682 = vsyncpa [#allocation3], 1
    %1683 = vsyncpa [#allocation6], 1
    %1684 = vsyncpa [#allocation4], 1
    %1685 = vsyncpa [#allocation9], 1

</llo_original>
